<compile_context>
chip_gen: v7x
topology: tpu7x:2x2x1
jax: 0.10.0
libtpu: 0.0.40
codegen_flags: <defaults>
</compile_context>

<pallas_src>
import functools

import jax
import jax.numpy as jnp
from jax.experimental import pallas as pl
from jax.experimental.pallas import tpu as pltpu


VMEM_SPEC = pl.BlockSpec(memory_space=pltpu.MemorySpace.VMEM)
SMEM_SPEC = pl.BlockSpec(memory_space=pltpu.MemorySpace.SMEM)


def _round_up(x, m):
    return ((x + m - 1) // m) * m


# ----------------------------- in-kernel helpers -----------------------------

def _cell_apply(gates, c, H):
    """torch.nn.LSTMCell nonlinearity (gate order i, f, g, o); gates include biases."""
    i = jax.nn.sigmoid(gates[:, 0:H])
    f = jax.nn.sigmoid(gates[:, H:2 * H])
    g = jnp.tanh(gates[:, 2 * H:3 * H])
    o = jax.nn.sigmoid(gates[:, 3 * H:4 * H])
    c_new = f * c + i * g
    h_new = o * jnp.tanh(c_new)
    return h_new, c_new


def _lstm_step(x, h, c, wx, wh, b, H):
    gates = (jnp.dot(x, wx, preferred_element_type=jnp.float32)
             + jnp.dot(h, wh, preferred_element_type=jnp.float32) + b)
    return _cell_apply(gates, c, H)


# --------------------------- buffer initialization ----------------------------

def _make_buffer_init_kernel(MAXT, XP, H):
    def kernel(n_ref, seq_ref, cell_ref, consts_ref, hc_ref):
        n = n_ref[0]
        # input-gate matmul for ALL timesteps hoisted out of the recurrent scan
        xg = (jnp.dot(seq_ref[...], cell_ref[0:XP, :],
                      preferred_element_type=jnp.float32)
              + cell_ref[XP + H:XP + H + 1, :])                     # (MAXT, 4H)
        wh = cell_ref[XP:XP + H, :]
        h = consts_ref[0:1, 0:H]
        c = consts_ref[0:1, H:2 * H]
        for i in range(MAXT):            # small bucketed static trip count
            gates = xg[i:i + 1, :] + jnp.dot(h, wh, preferred_element_type=jnp.float32)
            h_new, c_new = _cell_apply(gates, c, H)
            valid = i < n
            h = jnp.where(valid, h_new, h)
            c = jnp.where(valid, c_new, c)
            hc_ref[i] = jnp.concatenate([h, c], axis=-1)
    return kernel


@functools.lru_cache(maxsize=None)
def _get_buffer_init_fn(MAXT, XP, H):
    kernel = _make_buffer_init_kernel(MAXT, XP, H)

    @jax.jit
    def run(n_arr, seq, cell, consts):
        return pl.pallas_call(
            kernel,
            in_specs=[SMEM_SPEC, VMEM_SPEC, VMEM_SPEC, VMEM_SPEC],
            out_shape=jax.ShapeDtypeStruct((MAXT, 1, 2 * H), jnp.float32),
        )(n_arr, seq, cell, consts)

    return run


# ------------------------------ fused step kernel ------------------------------

def _make_step_kernel(MAXT, XP, H, A, SHIFT_ID, OUT_ID, NER_IDS):
    H4 = 4 * H

    def kernel(lens_ref,          # SMEM (4,) int32: buf_len, stk_len, out_len, act_len
               cells2_ref,        # (2, XP+H+8, 4H)   [0]=action cell, [1]=output cell
               fbpack_ref,        # (2, XP+2H+8, 8H)  [0]=stack|output pair, [1]=ent_f|ent_b pair
               scorer_ref,        # (4H+H+16, H)      w1 | b1 | w2(padded) | b2(padded)
               ent2out_ref,       # (2H+XP+8, XP)     entity_2_output packed
               emb_ref,           # (2, H, XP)        [0]=action emb table, [1]=relation emb
               consts_ref,        # (8, 2H)           row0=[init_h|init_c], row1=[empty|0]
               buf_hc_ref,        # (MAXT, 1, 2H)     buffer LSTM states, push order
               buf_tok_ref,       # (MAXT, 1, XP)     buffer token embeddings, push order
               tops_in_ref,       # (8, 2H)  rows: 0 act, 1 stk, 2 out, 3 ent_f, 4 ent_b
               stk_tok_in_ref,    # (MAXT, XP)        stack token embeddings, bottom..top
               idx_ref,           # (1, 1) int32      [out] selected action id
               tops_out_ref,      # (8, 2H)           [out]
               stk_tok_out_ref,   # (MAXT, XP)        [out]
               ):
        buf_len = lens_ref[0]
        stk_len = lens_ref[1]
        out_len = lens_ref[2]
        act_len = lens_ref[3]

        init_hc = consts_ref[0:1, :]
        empty = consts_ref[1:2, 0:H]

        buf_top = buf_hc_ref[jnp.maximum(buf_len - 1, 0)]            # (1, 2H)
        tok = buf_tok_ref[jnp.maximum(buf_len - 1, 0)]               # (1, XP)

        act_hc = tops_in_ref[0:1, :]
        stk_hc = tops_in_ref[1:2, :]
        out_hc = tops_in_ref[2:3, :]
        entf_hc = tops_in_ref[3:4, :]
        entb_hc = tops_in_ref[4:5, :]

        # ------------------ scorer + masked argmax (in-kernel) ------------------
        b_emb = jnp.where(buf_len > 0, buf_top[:, 0:H], empty)
        s_emb = jnp.where(stk_len > 0, stk_hc[:, 0:H], empty)
        o_emb = jnp.where(out_len > 0, out_hc[:, 0:H], empty)
        a_emb = jnp.where(act_len > 0, act_hc[:, 0:H], empty)

        pre = (jnp.dot(b_emb, scorer_ref[0:H, :], preferred_element_type=jnp.float32)
               + jnp.dot(s_emb, scorer_ref[H:2 * H, :], preferred_element_type=jnp.float32)
               + jnp.dot(o_emb, scorer_ref[2 * H:3 * H, :], preferred_element_type=jnp.float32)
               + jnp.dot(a_emb, scorer_ref[3 * H:4 * H, :], preferred_element_type=jnp.float32)
               + scorer_ref[H4:H4 + 1, :])
        hid = jnp.tanh(pre)                                          # (1, H)
        logits = (jnp.dot(hid, scorer_ref[H4 + 8:H4 + 8 + H, :],
                          preferred_element_type=jnp.float32)
                  + scorer_ref[H4 + 8 + H:H4 + 9 + H, :])            # (1, H), cols >= A padded

        ids = jax.lax.broadcasted_iota(jnp.int32, logits.shape, 1)
        valid = (ids == SHIFT_ID) & (buf_len > 0)
        valid = valid | ((ids == OUT_ID) & (stk_len == 0))
        is_ner = ids < 0                                             # all-False
        for nid in NER_IDS:
            is_ner = is_ner | (ids == nid)
        valid = valid | (is_ner & (stk_len > 0))

        masked = jnp.where(valid, logits, jnp.full_like(logits, -1e30))
        best = jnp.max(masked, axis=1, keepdims=True)                # (1, 1)
        cand = jnp.where(masked >= best, ids, jnp.full_like(ids, A))
        idx_v = jnp.minimum(jnp.min(cand, axis=1, keepdims=True), A - 1)   # (1, 1) int32
        idx_ref[...] = idx_v

        is_shift = idx_v == SHIFT_ID                                 # (1, 1) bool
        is_out = idx_v == OUT_ID
        is_red = jnp.logical_not(jnp.logical_or(is_shift, is_out))

        # one-hot gather of the action / relation embedding rows (no host round-trip)
        onehot = (ids == idx_v).astype(jnp.float32)                  # (1, H)
        act_emb = jnp.dot(onehot, emb_ref[0, :, :], preferred_element_type=jnp.float32)
        rel_emb = jnp.dot(onehot, emb_ref[1, :, :], preferred_element_type=jnp.float32)

        # ------------------ action-LSTM push (every transition) ------------------
        a_state = jnp.where(act_len > 0, act_hc, init_hc)
        ha, ca = _lstm_step(act_emb, a_state[:, 0:H], a_state[:, H:2 * H],
                            cells2_ref[0, 0:XP, :],
                            cells2_ref[0, XP:XP + H, :],
                            cells2_ref[0, XP + H:XP + H + 1, :], H)
        row0 = jnp.concatenate([ha, ca], axis=-1)

        # ------------------ SHIFT / OUT candidate push ---------------------------
        s_state = jnp.where(stk_len > 0, stk_hc, init_hc)
        o_state = jnp.where(out_len > 0, out_hc, init_hc)
        # both candidate cells' gates: one N=2*4H x-matmul + one block-diag h-matmul
        xg = jnp.dot(tok, fbpack_ref[0, 0:XP, :], preferred_element_type=jnp.float32)
        hso = jnp.concatenate([s_state[:, 0:H], o_state[:, 0:H]], axis=-1)
        hg = jnp.dot(hso, fbpack_ref[0, XP:XP + 2 * H, :], preferred_element_type=jnp.float32)
        gboth = xg + hg + fbpack_ref[0, XP + 2 * H:XP + 2 * H + 1, :]
        gates_so = jnp.where(is_shift, gboth[:, 0:H4], gboth[:, H4:2 * H4])
        c_prev_so = jnp.where(is_shift, s_state[:, H:2 * H], o_state[:, H:2 * H])
        h_so, c_so = _cell_apply(gates_so, c_prev_so, H)
        hc_so = jnp.concatenate([h_so, c_so], axis=-1)

        # ------------------ REDUCE path (entity scans + output push) -------------
        toks = stk_tok_in_ref[...]                                   # (MAXT, XP)
        # x-gates for BOTH scans, all rows, in one matmul (hoisted out of the scan)
        xg_all = (jnp.dot(toks, fbpack_ref[1, 0:XP, :], preferred_element_type=jnp.float32)
                  + fbpack_ref[1, XP + 2 * H:XP + 2 * H + 1, :])     # (MAXT, 8H)
        wh_fb = fbpack_ref[1, XP:XP + 2 * H, :]                      # (2H, 8H) block-diag

        hf = entf_hc[:, 0:H]
        cf = entf_hc[:, H:2 * H]
        hb = entb_hc[:, 0:H]
        cb = entb_hc[:, H:2 * H]
        # forward scan visits rows stk_len-1 .. 0 (stack-pop order, matching the
        # PyTorch ent_f pushes); backward scan visits rows 0 .. stk_len-1.
        for i in range(MAXT):
            rf = MAXT - 1 - i
            rb = i
            hfb = jnp.concatenate([hf, hb], axis=-1)
            hg_fb = jnp.dot(hfb, wh_fb, preferred_element_type=jnp.float32)
            g_f = xg_all[rf:rf + 1, 0:H4] + hg_fb[:, 0:H4]
            g_b = xg_all[rb:rb + 1, H4:2 * H4] + hg_fb[:, H4:2 * H4]
            hf_n, cf_n = _cell_apply(g_f, cf, H)
            hb_n, cb_n = _cell_apply(g_b, cb, H)
            vf = rf < stk_len
            vb = rb < stk_len
            hf = jnp.where(vf, hf_n, hf)
            cf = jnp.where(vf, cf_n, cf)
            hb = jnp.where(vb, hb_n, hb)
            cb = jnp.where(vb, cb_n, cb)

        # entity_2_output( [ent_f.embedding(), ent_b.embedding(), rel] )
        oi = (jnp.dot(hf, ent2out_ref[0:H, :], preferred_element_type=jnp.float32)
              + jnp.dot(hb, ent2out_ref[H:2 * H, :], preferred_element_type=jnp.float32)
              + jnp.dot(rel_emb, ent2out_ref[2 * H:2 * H + XP, :],
                        preferred_element_type=jnp.float32)
              + ent2out_ref[2 * H + XP:2 * H + XP + 1, :])           # (1, XP)
        ho, co = _lstm_step(oi, o_state[:, 0:H], o_state[:, H:2 * H],
                            cells2_ref[1, 0:XP, :],
                            cells2_ref[1, XP:XP + H, :],
                            cells2_ref[1, XP + H:XP + H + 1, :], H)
        hc_red = jnp.concatenate([ho, co], axis=-1)
        hc_f = jnp.concatenate([hf, cf], axis=-1)
        hc_b = jnp.concatenate([hb, cb], axis=-1)

        # ------------------ commit new top states (single dense store) -----------
        row1 = jnp.where(is_shift, hc_so, stk_hc)
        row2 = jnp.where(is_out, hc_so, jnp.where(is_red, hc_red, out_hc))
        # clear() keeps the most recently pushed state as the new base state
        row3 = jnp.where(is_red, hc_f, entf_hc)
        row4 = jnp.where(is_red, hc_b, entb_hc)
        tops_out_ref[...] = jnp.concatenate(
            [row0, row1, row2, row3, row4, tops_in_ref[5:8, :]], axis=0)

        # stack token buffer: SHIFT writes the buffer-top token at row stk_len
        rows = jax.lax.broadcasted_iota(jnp.int32, (MAXT, XP), 0)
        stk_tok_out_ref[...] = jnp.where(
            jnp.logical_and(is_shift, rows == stk_len),
            jnp.broadcast_to(tok, (MAXT, XP)),
            stk_tok_in_ref[...])

    return kernel


@functools.lru_cache(maxsize=None)
def _get_step_fn(MAXT, XP, H, A, SHIFT_ID, OUT_ID, NER_IDS):
    kernel = _make_step_kernel(MAXT, XP, H, A, SHIFT_ID, OUT_ID, NER_IDS)

    @jax.jit
    def run(lens, cells2, fbpack, scorer, ent2out, emb_tab, consts,
            buf_hc, buf_tok, tops, stk_tok):
        return pl.pallas_call(
            kernel,
            in_specs=[SMEM_SPEC] + [VMEM_SPEC] * 10,
            out_shape=(jax.ShapeDtypeStruct((1, 1), jnp.int32),
                       jax.ShapeDtypeStruct((8, 2 * H), jnp.float32),
                       jax.ShapeDtypeStruct((MAXT, XP), jnp.float32)),
        )(lens, cells2, fbpack, scorer, ent2out, emb_tab, consts,
          buf_hc, buf_tok, tops, stk_tok)

    return run


# ------------------------------- parameters -----------------------------------

def init_params(key, vocab_size, embed_dim, action_embed_dim, hidden_dim,
                num_actions, tok_dim):
    ks = jax.random.split(key, 18)

    def u(k, shape, scale=0.1):
        return jax.random.uniform(k, shape, jnp.float32, -scale, scale)

    def lstm_cell_params(k, in_dim):
        k1, k2, k3 = jax.random.split(k, 3)
        return {'wih_t': u(k1, (in_dim, 4 * hidden_dim)),
                'whh_t': u(k2, (hidden_dim, 4 * hidden_dim)),
                'b':     u(k3, (1, 4 * hidden_dim))}   # b_ih + b_hh folded

    return {
        'word_emb':      u(ks[0], (vocab_size, embed_dim)),
        'action_emb':    u(ks[1], (num_actions, action_embed_dim)),
        'relation_emb':  u(ks[2], (num_actions, action_embed_dim)),
        'buffer_lstm':   lstm_cell_params(ks[3], tok_dim),
        'stack_lstm':    lstm_cell_params(ks[4], tok_dim),
        'action_lstm':   lstm_cell_params(ks[5], action_embed_dim),
        'output_lstm':   lstm_cell_params(ks[6], tok_dim),
        'entity_f_lstm': lstm_cell_params(ks[7], tok_dim),
        'entity_b_lstm': lstm_cell_params(ks[8], tok_dim),
        'empty_emb':     u(ks[9], (1, hidden_dim)),
        'lstm_init_h':   u(ks[10], (1, hidden_dim)),   # utils.xavier_init
        'lstm_init_c':   u(ks[11], (1, hidden_dim)),
        'w1_t':          u(ks[12], (4 * hidden_dim, hidden_dim)),  # lstms_output_2_softmax
        'b1':            u(ks[13], (1, hidden_dim)),
        'w2_t':          u(ks[14], (hidden_dim, num_actions)),     # output_2_act
        'b2':            u(ks[15], (1, num_actions)),
        'we_t':          u(ks[16], (2 * hidden_dim + action_embed_dim, tok_dim)),  # entity_2_output
        'be':            u(ks[17], (1, tok_dim)),
    }


def pack_params(p, H, E, AE, A):
    """Host-side one-time weight packing (fewer, larger per-step DMAs)."""
    H4 = 4 * H
    XP = _round_up(max(E, AE), 8)

    def cell_block(cell, in_dim):
        blk = jnp.zeros((XP + H + 8, H4), jnp.float32)
        blk = blk.at[0:in_dim, :].set(cell['wih_t'])
        blk = blk.at[XP:XP + H, :].set(cell['whh_t'])
        blk = blk.at[XP + H, :].set(cell['b'][0])
        return blk

    def pair_block(cl, in_l, cr, in_r):
        # x-weights side by side, h-weights block-diagonal, biases side by side
        blk = jnp.zeros((XP + 2 * H + 8, 2 * H4), jnp.float32)
        blk = blk.at[0:in_l, 0:H4].set(cl['wih_t'])
        blk = blk.at[0:in_r, H4:2 * H4].set(cr['wih_t'])
        blk = blk.at[XP:XP + H, 0:H4].set(cl['whh_t'])
        blk = blk.at[XP + H:XP + 2 * H, H4:2 * H4].set(cr['whh_t'])
        blk = blk.at[XP + 2 * H, 0:H4].set(cl['b'][0])
        blk = blk.at[XP + 2 * H, H4:2 * H4].set(cr['b'][0])
        return blk

    cells2 = jnp.stack([cell_block(p['action_lstm'], AE),
                        cell_block(p['output_lstm'], E)], axis=0)
    fbpack = jnp.stack([pair_block(p['stack_lstm'], E, p['output_lstm'], E),
                        pair_block(p['entity_f_lstm'], E, p['entity_b_lstm'], E)],
                       axis=0)

    scorer = jnp.zeros((H4 + H + 16, H), jnp.float32)
    scorer = scorer.at[0:H4, :].set(p['w1_t'])
    scorer = scorer.at[H4, :].set(p['b1'][0])
    scorer = scorer.at[H4 + 8:H4 + 8 + H, 0:A].set(p['w2_t'])
    scorer = scorer.at[H4 + 8 + H, 0:A].set(p['b2'][0])

    ent2out = jnp.zeros((2 * H + XP + 8, XP), jnp.float32)
    ent2out = ent2out.at[0:2 * H + AE, 0:E].set(p['we_t'])
    ent2out = ent2out.at[2 * H + XP, 0:E].set(p['be'][0])

    emb_tab = jnp.zeros((2, H, XP), jnp.float32)
    emb_tab = emb_tab.at[0, 0:A, 0:AE].set(p['action_emb'])
    emb_tab = emb_tab.at[1, 0:A, 0:AE].set(p['relation_emb'])

    consts = jnp.zeros((8, 2 * H), jnp.float32)
    consts = consts.at[0, 0:H].set(p['lstm_init_h'][0])
    consts = consts.at[0, H:2 * H].set(p['lstm_init_c'][0])
    consts = consts.at[1, 0:H].set(p['empty_emb'][0])

    buf_cell = cell_block(p['buffer_lstm'], E)

    return dict(cells2=cells2, fbpack=fbpack, scorer=scorer, ent2out=ent2out,
                emb_tab=emb_tab, consts=consts, buf_cell=buf_cell)


# -------------------------------- forward --------------------------------------

def transition_ner_forward(params, packed, sentence, action2idx, idx2action,
                           ner_map, idx2word, hidden_dim, embed_dim,
                           action_embed_dim):
    """Predict-mode forward (actions=None).  Returns (loss, [pre_actions], out_emb)."""
    H, E, AE = hidden_dim, embed_dim, action_embed_dim
    XP = _round_up(max(E, AE), 8)
    A = len(ner_map) + 2
    assert A <= H, "action-count padding assumes len(ner_map)+2 <= hidden_dim"

    sentence_ids = [int(t) for t in jax.device_get(sentence).reshape(-1)]   # squeeze(0)
    T = len(sentence_ids)

    # token representations (use_spelling=False): word_idx 0 always kept, PAD(=1) skipped after
    keep = [0] + [i for i in range(1, T) if sentence_ids[i] != 1]
    n_tok = len(keep)
    MAXT = max(8, _round_up(n_tok, 8))          # bucketed -> one compile per bucket

    push_rows = [keep[n_tok - 1 - j] for j in range(n_tok)]          # embedding rows, push order
    push_ids = [sentence_ids[n_tok - 1 - j] for j in range(n_tok)]   # sentence.data[...] (original quirk)
    buf_tokens = [idx2word[t] for t in push_ids]

    emb_rows = params['word_emb'][jnp.asarray(push_rows)]             # (n_tok, E); dropout_e = identity
    seq = jnp.zeros((MAXT, XP), jnp.float32).at[0:n_tok, 0:E].set(emb_rows)

    # ---- buffer initialization: all n_tok LSTM pushes in ONE pallas_call ----
    buf_init = _get_buffer_init_fn(MAXT, XP, H)
    buf_hc = buf_init(jnp.asarray([n_tok], jnp.int32), seq,
                      packed['buf_cell'], packed['consts'])           # (MAXT, 1, 2H)
    buf_tok = seq.reshape(MAXT, 1, XP)

    SHIFT = action2idx['SHIFT']
    OUT = action2idx['OUT']
    ner_ids = tuple(sorted(action2idx[a] for a in ner_map.keys()))
    step_fn = _get_step_fn(MAXT, XP, H, A, SHIFT, OUT, ner_ids)

    # device-resident per-stack top states: rows 0 act, 1 stk, 2 out, 3 ent_f, 4 ent_b
    tops = jnp.tile(packed['consts'][0:1, :], (8, 1))
    stk_tok = jnp.zeros((MAXT, XP), jnp.float32)

    buf_len, stk_len, out_len, act_len = n_tok, 0, 0, 0
    stack_tokens = []
    entities = []
    pre_actions = []

    while buf_len > 0 or stk_len > 0:
        lens = jnp.asarray([buf_len, stk_len, out_len, act_len], dtype=jnp.int32)
        idx_arr, tops, stk_tok = step_fn(
            lens, packed['cells2'], packed['fbpack'], packed['scorer'],
            packed['ent2out'], packed['emb_tab'], packed['consts'],
            buf_hc, buf_tok, tops, stk_tok)
        a = int(idx_arr[0, 0])               # the ONLY device->host sync per transition

        n_valid = (1 if buf_len > 0 else 0) + (len(ner_ids) if stk_len > 0 else 1)
        if n_valid > 1:                      # original only records scored steps
            pre_actions.append(a)
        real_action = idx2action[a]
        act_len += 1

        if real_action.startswith('S'):
            stack_tokens.append(buf_tokens[buf_len - 1])
            buf_len -= 1
            stk_len += 1
        elif real_action.startswith('O'):
            buf_len -= 1
            out_len += 1
        else:                                # REDUCE-*
            ent_list = list(reversed(stack_tokens))      # stack-pop (LIFO) order
            if len(ent_list) > 1:
                ent = ''.join(t + ' ' for t in ent_list)
            else:
                ent = ent_list[0]
            entities.append(ent)
            stack_tokens = []
            stk_len = 0
            out_len += 1

    out_emb = tops[2:3, 0:H] if out_len > 0 else params['empty_emb']
    loss = -1                                # predict mode
    return loss, [pre_actions], out_emb


# ---------------------------------- main ---------------------------------------

if __name__ == "__main__":
    HIDDEN = 32          # hidden_dim
    EMBED = 32           # embedding_dim == tok_embedding_dim (use_spelling=False)
    ACTION_EMBED = 16    # action_embedding_dim
    VOCAB = 20
    SEQ = 8

    ner_map = {'REDUCE-PER': 'PER', 'REDUCE-LOC': 'LOC'}
    action2idx = {'SHIFT': 0, 'OUT': 1, 'REDUCE-PER': 2, 'REDUCE-LOC': 3}
    idx2action = {v: k for k, v in action2idx.items()}
    word2idx = {'<unk>': 0, '<pad>': 1}
    for w in range(2, VOCAB):
        word2idx['w%d' % w] = w
    idx2word = {v: k for k, v in word2idx.items()}

    key = jax.random.PRNGKey(0)
    k_params, k_sent = jax.random.split(key)
    params = init_params(k_params, VOCAB, EMBED, ACTION_EMBED, HIDDEN,
                         len(ner_map) + 2, EMBED)
    packed = pack_params(params, HIDDEN, EMBED, ACTION_EMBED, len(ner_map) + 2)

    sentence = jax.random.randint(k_sent, (1, SEQ), 2, VOCAB, dtype=jnp.int32)

    loss, predicted_actions, final_out_emb = transition_ner_forward(
        params, packed, sentence, action2idx, idx2action, ner_map, idx2word,
        HIDDEN, EMBED, ACTION_EMBED)
    final_out_emb = jax.block_until_ready(final_out_emb)

    assert bool(jnp.all(jnp.isfinite(final_out_emb)))
    assert len(predicted_actions[0]) > 0

    print("KERNEL_OK")
</pallas_src>

<mosaic_0001>
module attributes {stable_mosaic.version = 11 : i64} {
  func.func @kernel(%arg0: memref<1xi32, #tpu.memory_space<smem>>, %arg1: memref<8x32xf32, #tpu.memory_space<vmem>>, %arg2: memref<72x128xf32, #tpu.memory_space<vmem>>, %arg3: memref<8x64xf32, #tpu.memory_space<vmem>>, %arg4: memref<8x1x64xf32, #tpu.memory_space<vmem>>) attributes {dimension_semantics = [], scalar_prefetch = 0 : i64, scratch_operands = 0 : i64, tpu.core_type = #tpu.core_type<tc>} {
    %c0 = arith.constant 0 : index
    %0 = memref.load %arg0[%c0] : memref<1xi32, #tpu.memory_space<smem>>
    %c0_0 = arith.constant 0 : index
    %c0_1 = arith.constant 0 : index
    %1 = vector.load %arg1[%c0_0, %c0_1] : memref<8x32xf32, #tpu.memory_space<vmem>>, vector<8x32xf32>
    %c0_2 = arith.constant 0 : index
    %c0_3 = arith.constant 0 : index
    %2 = vector.load %arg2[%c0_2, %c0_3] : memref<72x128xf32, #tpu.memory_space<vmem>>, vector<32x128xf32>
    %cst = arith.constant dense<0.000000e+00> : vector<8x128xf32>
    %3 = tpu.matmul %1, %2, %cst {dimension_numbers = #tpu.dot_dimension_numbers<[1], [0], [0], [1], [0, 0, 1, 1], [], []>} : vector<8x32xf32>, vector<32x128xf32>, vector<8x128xf32> -> vector<8x128xf32>
    %c64 = arith.constant 64 : index
    %c0_4 = arith.constant 0 : index
    %4 = vector.load %arg2[%c64, %c0_4] : memref<72x128xf32, #tpu.memory_space<vmem>>, vector<1x128xf32>
    %5 = vector.broadcast %4 : vector<1x128xf32> to vector<8x128xf32>
    %6 = arith.addf %3, %5 : vector<8x128xf32>
    %c32 = arith.constant 32 : index
    %c0_5 = arith.constant 0 : index
    %7 = vector.load %arg2[%c32, %c0_5] : memref<72x128xf32, #tpu.memory_space<vmem>>, vector<32x128xf32>
    %c0_6 = arith.constant 0 : index
    %c0_7 = arith.constant 0 : index
    %8 = vector.load %arg3[%c0_6, %c0_7] : memref<8x64xf32, #tpu.memory_space<vmem>>, vector<1x32xf32>
    %c0_8 = arith.constant 0 : index
    %c32_9 = arith.constant 32 : index
    %9 = vector.load %arg3[%c0_8, %c32_9] : memref<8x64xf32, #tpu.memory_space<vmem>>, vector<1x32xf32>
    %10 = vector.extract_strided_slice %6 {offsets = [0, 0], sizes = [1, 128], strides = [1, 1]} : vector<8x128xf32> to vector<1x128xf32>
    %cst_10 = arith.constant dense<0.000000e+00> : vector<1x128xf32>
    %11 = tpu.matmul %8, %7, %cst_10 {dimension_numbers = #tpu.dot_dimension_numbers<[1], [0], [0], [1], [0, 0, 1, 1], [], []>} : vector<1x32xf32>, vector<32x128xf32>, vector<1x128xf32> -> vector<1x128xf32>
    %12 = arith.addf %10, %11 : vector<1x128xf32>
    %13 = vector.extract_strided_slice %12 {offsets = [0, 0], sizes = [1, 32], strides = [1, 1]} : vector<1x128xf32> to vector<1x32xf32>
    %14 = arith.negf %13 : vector<1x32xf32>
    %15 = math.exp %14 : vector<1x32xf32>
    %cst_11 = arith.constant 1.000000e+00 : f32
    %16 = vector.broadcast %cst_11 : f32 to vector<1x32xf32>
    %17 = arith.addf %16, %15 : vector<1x32xf32>
    %18 = arith.divf %16, %17 : vector<1x32xf32>
    %19 = vector.extract_strided_slice %12 {offsets = [0, 32], sizes = [1, 32], strides = [1, 1]} : vector<1x128xf32> to vector<1x32xf32>
    %20 = arith.negf %19 : vector<1x32xf32>
    %21 = math.exp %20 : vector<1x32xf32>
    %cst_12 = arith.constant 1.000000e+00 : f32
    %22 = vector.broadcast %cst_12 : f32 to vector<1x32xf32>
    %23 = arith.addf %22, %21 : vector<1x32xf32>
    %24 = arith.divf %22, %23 : vector<1x32xf32>
    %25 = vector.extract_strided_slice %12 {offsets = [0, 64], sizes = [1, 32], strides = [1, 1]} : vector<1x128xf32> to vector<1x32xf32>
    %26 = math.tanh %25 : vector<1x32xf32>
    %27 = vector.extract_strided_slice %12 {offsets = [0, 96], sizes = [1, 32], strides = [1, 1]} : vector<1x128xf32> to vector<1x32xf32>
    %28 = arith.negf %27 : vector<1x32xf32>
    %29 = math.exp %28 : vector<1x32xf32>
    %cst_13 = arith.constant 1.000000e+00 : f32
    %30 = vector.broadcast %cst_13 : f32 to vector<1x32xf32>
    %31 = arith.addf %30, %29 : vector<1x32xf32>
    %32 = arith.divf %30, %31 : vector<1x32xf32>
    %33 = arith.mulf %24, %9 : vector<1x32xf32>
    %34 = arith.mulf %18, %26 : vector<1x32xf32>
    %35 = arith.addf %33, %34 : vector<1x32xf32>
    %36 = math.tanh %35 : vector<1x32xf32>
    %37 = arith.mulf %32, %36 : vector<1x32xf32>
    %c0_i32 = arith.constant 0 : i32
    %38 = arith.cmpi sgt, %0, %c0_i32 : i32
    %39 = arith.select %38, %37, %8 : vector<1x32xf32>
    %40 = arith.select %38, %35, %9 : vector<1x32xf32>
    %41 = tpu.concatenate %39, %40 in 1 : vector<1x32xf32>, vector<1x32xf32> -> vector<1x64xf32>
    %c0_14 = arith.constant 0 : index
    %c0_15 = arith.constant 0 : index
    %c0_16 = arith.constant 0 : index
    %42 = vector.load %arg4[%c0_14, %c0_15, %c0_16] : memref<8x1x64xf32, #tpu.memory_space<vmem>>, vector<1x1x64xf32>
    %43 = vector.shape_cast %42 : vector<1x1x64xf32> to vector<1x64xf32>
    %44 = vector.shape_cast %41 : vector<1x64xf32> to vector<1x1x64xf32>
    tpu.vector_store %arg4[%c0_14, %c0_15, %c0_16], %44 {strides = array<i32>} : memref<8x1x64xf32, #tpu.memory_space<vmem>>, vector<1x1x64xf32>,
    %45 = vector.extract_strided_slice %6 {offsets = [1, 0], sizes = [1, 128], strides = [1, 1]} : vector<8x128xf32> to vector<1x128xf32>
    %cst_17 = arith.constant dense<0.000000e+00> : vector<1x128xf32>
    %46 = tpu.matmul %39, %7, %cst_17 {dimension_numbers = #tpu.dot_dimension_numbers<[1], [0], [0], [1], [0, 0, 1, 1], [], []>} : vector<1x32xf32>, vector<32x128xf32>, vector<1x128xf32> -> vector<1x128xf32>
    %47 = arith.addf %45, %46 : vector<1x128xf32>
    %48 = vector.extract_strided_slice %47 {offsets = [0, 0], sizes = [1, 32], strides = [1, 1]} : vector<1x128xf32> to vector<1x32xf32>
    %49 = arith.negf %48 : vector<1x32xf32>
    %50 = math.exp %49 : vector<1x32xf32>
    %cst_18 = arith.constant 1.000000e+00 : f32
    %51 = vector.broadcast %cst_18 : f32 to vector<1x32xf32>
    %52 = arith.addf %51, %50 : vector<1x32xf32>
    %53 = arith.divf %51, %52 : vector<1x32xf32>
    %54 = vector.extract_strided_slice %47 {offsets = [0, 32], sizes = [1, 32], strides = [1, 1]} : vector<1x128xf32> to vector<1x32xf32>
    %55 = arith.negf %54 : vector<1x32xf32>
    %56 = math.exp %55 : vector<1x32xf32>
    %cst_19 = arith.constant 1.000000e+00 : f32
    %57 = vector.broadcast %cst_19 : f32 to vector<1x32xf32>
    %58 = arith.addf %57, %56 : vector<1x32xf32>
    %59 = arith.divf %57, %58 : vector<1x32xf32>
    %60 = vector.extract_strided_slice %47 {offsets = [0, 64], sizes = [1, 32], strides = [1, 1]} : vector<1x128xf32> to vector<1x32xf32>
    %61 = math.tanh %60 : vector<1x32xf32>
    %62 = vector.extract_strided_slice %47 {offsets = [0, 96], sizes = [1, 32], strides = [1, 1]} : vector<1x128xf32> to vector<1x32xf32>
    %63 = arith.negf %62 : vector<1x32xf32>
    %64 = math.exp %63 : vector<1x32xf32>
    %cst_20 = arith.constant 1.000000e+00 : f32
    %65 = vector.broadcast %cst_20 : f32 to vector<1x32xf32>
    %66 = arith.addf %65, %64 : vector<1x32xf32>
    %67 = arith.divf %65, %66 : vector<1x32xf32>
    %68 = arith.mulf %59, %40 : vector<1x32xf32>
    %69 = arith.mulf %53, %61 : vector<1x32xf32>
    %70 = arith.addf %68, %69 : vector<1x32xf32>
    %71 = math.tanh %70 : vector<1x32xf32>
    %72 = arith.mulf %67, %71 : vector<1x32xf32>
    %c1_i32 = arith.constant 1 : i32
    %73 = arith.cmpi sgt, %0, %c1_i32 : i32
    %74 = arith.select %73, %72, %39 : vector<1x32xf32>
    %75 = arith.select %73, %70, %40 : vector<1x32xf32>
    %76 = tpu.concatenate %74, %75 in 1 : vector<1x32xf32>, vector<1x32xf32> -> vector<1x64xf32>
    %c1 = arith.constant 1 : index
    %c0_21 = arith.constant 0 : index
    %c0_22 = arith.constant 0 : index
    %77 = vector.load %arg4[%c1, %c0_21, %c0_22] : memref<8x1x64xf32, #tpu.memory_space<vmem>>, vector<1x1x64xf32>
    %78 = vector.shape_cast %77 : vector<1x1x64xf32> to vector<1x64xf32>
    %79 = vector.shape_cast %76 : vector<1x64xf32> to vector<1x1x64xf32>
    tpu.vector_store %arg4[%c1, %c0_21, %c0_22], %79 {strides = array<i32>} : memref<8x1x64xf32, #tpu.memory_space<vmem>>, vector<1x1x64xf32>,
    %80 = vector.extract_strided_slice %6 {offsets = [2, 0], sizes = [1, 128], strides = [1, 1]} : vector<8x128xf32> to vector<1x128xf32>
    %cst_23 = arith.constant dense<0.000000e+00> : vector<1x128xf32>
    %81 = tpu.matmul %74, %7, %cst_23 {dimension_numbers = #tpu.dot_dimension_numbers<[1], [0], [0], [1], [0, 0, 1, 1], [], []>} : vector<1x32xf32>, vector<32x128xf32>, vector<1x128xf32> -> vector<1x128xf32>
    %82 = arith.addf %80, %81 : vector<1x128xf32>
    %83 = vector.extract_strided_slice %82 {offsets = [0, 0], sizes = [1, 32], strides = [1, 1]} : vector<1x128xf32> to vector<1x32xf32>
    %84 = arith.negf %83 : vector<1x32xf32>
    %85 = math.exp %84 : vector<1x32xf32>
    %cst_24 = arith.constant 1.000000e+00 : f32
    %86 = vector.broadcast %cst_24 : f32 to vector<1x32xf32>
    %87 = arith.addf %86, %85 : vector<1x32xf32>
    %88 = arith.divf %86, %87 : vector<1x32xf32>
    %89 = vector.extract_strided_slice %82 {offsets = [0, 32], sizes = [1, 32], strides = [1, 1]} : vector<1x128xf32> to vector<1x32xf32>
    %90 = arith.negf %89 : vector<1x32xf32>
    %91 = math.exp %90 : vector<1x32xf32>
    %cst_25 = arith.constant 1.000000e+00 : f32
    %92 = vector.broadcast %cst_25 : f32 to vector<1x32xf32>
    %93 = arith.addf %92, %91 : vector<1x32xf32>
    %94 = arith.divf %92, %93 : vector<1x32xf32>
    %95 = vector.extract_strided_slice %82 {offsets = [0, 64], sizes = [1, 32], strides = [1, 1]} : vector<1x128xf32> to vector<1x32xf32>
    %96 = math.tanh %95 : vector<1x32xf32>
    %97 = vector.extract_strided_slice %82 {offsets = [0, 96], sizes = [1, 32], strides = [1, 1]} : vector<1x128xf32> to vector<1x32xf32>
    %98 = arith.negf %97 : vector<1x32xf32>
    %99 = math.exp %98 : vector<1x32xf32>
    %cst_26 = arith.constant 1.000000e+00 : f32
    %100 = vector.broadcast %cst_26 : f32 to vector<1x32xf32>
    %101 = arith.addf %100, %99 : vector<1x32xf32>
    %102 = arith.divf %100, %101 : vector<1x32xf32>
    %103 = arith.mulf %94, %75 : vector<1x32xf32>
    %104 = arith.mulf %88, %96 : vector<1x32xf32>
    %105 = arith.addf %103, %104 : vector<1x32xf32>
    %106 = math.tanh %105 : vector<1x32xf32>
    %107 = arith.mulf %102, %106 : vector<1x32xf32>
    %c2_i32 = arith.constant 2 : i32
    %108 = arith.cmpi sgt, %0, %c2_i32 : i32
    %109 = arith.select %108, %107, %74 : vector<1x32xf32>
    %110 = arith.select %108, %105, %75 : vector<1x32xf32>
    %111 = tpu.concatenate %109, %110 in 1 : vector<1x32xf32>, vector<1x32xf32> -> vector<1x64xf32>
    %c2 = arith.constant 2 : index
    %c0_27 = arith.constant 0 : index
    %c0_28 = arith.constant 0 : index
    %112 = vector.load %arg4[%c2, %c0_27, %c0_28] : memref<8x1x64xf32, #tpu.memory_space<vmem>>, vector<1x1x64xf32>
    %113 = vector.shape_cast %112 : vector<1x1x64xf32> to vector<1x64xf32>
    %114 = vector.shape_cast %111 : vector<1x64xf32> to vector<1x1x64xf32>
    tpu.vector_store %arg4[%c2, %c0_27, %c0_28], %114 {strides = array<i32>} : memref<8x1x64xf32, #tpu.memory_space<vmem>>, vector<1x1x64xf32>,
    %115 = vector.extract_strided_slice %6 {offsets = [3, 0], sizes = [1, 128], strides = [1, 1]} : vector<8x128xf32> to vector<1x128xf32>
    %cst_29 = arith.constant dense<0.000000e+00> : vector<1x128xf32>
    %116 = tpu.matmul %109, %7, %cst_29 {dimension_numbers = #tpu.dot_dimension_numbers<[1], [0], [0], [1], [0, 0, 1, 1], [], []>} : vector<1x32xf32>, vector<32x128xf32>, vector<1x128xf32> -> vector<1x128xf32>
    %117 = arith.addf %115, %116 : vector<1x128xf32>
    %118 = vector.extract_strided_slice %117 {offsets = [0, 0], sizes = [1, 32], strides = [1, 1]} : vector<1x128xf32> to vector<1x32xf32>
    %119 = arith.negf %118 : vector<1x32xf32>
    %120 = math.exp %119 : vector<1x32xf32>
    %cst_30 = arith.constant 1.000000e+00 : f32
    %121 = vector.broadcast %cst_30 : f32 to vector<1x32xf32>
    %122 = arith.addf %121, %120 : vector<1x32xf32>
    %123 = arith.divf %121, %122 : vector<1x32xf32>
    %124 = vector.extract_strided_slice %117 {offsets = [0, 32], sizes = [1, 32], strides = [1, 1]} : vector<1x128xf32> to vector<1x32xf32>
    %125 = arith.negf %124 : vector<1x32xf32>
    %126 = math.exp %125 : vector<1x32xf32>
    %cst_31 = arith.constant 1.000000e+00 : f32
    %127 = vector.broadcast %cst_31 : f32 to vector<1x32xf32>
    %128 = arith.addf %127, %126 : vector<1x32xf32>
    %129 = arith.divf %127, %128 : vector<1x32xf32>
    %130 = vector.extract_strided_slice %117 {offsets = [0, 64], sizes = [1, 32], strides = [1, 1]} : vector<1x128xf32> to vector<1x32xf32>
    %131 = math.tanh %130 : vector<1x32xf32>
    %132 = vector.extract_strided_slice %117 {offsets = [0, 96], sizes = [1, 32], strides = [1, 1]} : vector<1x128xf32> to vector<1x32xf32>
    %133 = arith.negf %132 : vector<1x32xf32>
    %134 = math.exp %133 : vector<1x32xf32>
    %cst_32 = arith.constant 1.000000e+00 : f32
    %135 = vector.broadcast %cst_32 : f32 to vector<1x32xf32>
    %136 = arith.addf %135, %134 : vector<1x32xf32>
    %137 = arith.divf %135, %136 : vector<1x32xf32>
    %138 = arith.mulf %129, %110 : vector<1x32xf32>
    %139 = arith.mulf %123, %131 : vector<1x32xf32>
    %140 = arith.addf %138, %139 : vector<1x32xf32>
    %141 = math.tanh %140 : vector<1x32xf32>
    %142 = arith.mulf %137, %141 : vector<1x32xf32>
    %c3_i32 = arith.constant 3 : i32
    %143 = arith.cmpi sgt, %0, %c3_i32 : i32
    %144 = arith.select %143, %142, %109 : vector<1x32xf32>
    %145 = arith.select %143, %140, %110 : vector<1x32xf32>
    %146 = tpu.concatenate %144, %145 in 1 : vector<1x32xf32>, vector<1x32xf32> -> vector<1x64xf32>
    %c3 = arith.constant 3 : index
    %c0_33 = arith.constant 0 : index
    %c0_34 = arith.constant 0 : index
    %147 = vector.load %arg4[%c3, %c0_33, %c0_34] : memref<8x1x64xf32, #tpu.memory_space<vmem>>, vector<1x1x64xf32>
    %148 = vector.shape_cast %147 : vector<1x1x64xf32> to vector<1x64xf32>
    %149 = vector.shape_cast %146 : vector<1x64xf32> to vector<1x1x64xf32>
    tpu.vector_store %arg4[%c3, %c0_33, %c0_34], %149 {strides = array<i32>} : memref<8x1x64xf32, #tpu.memory_space<vmem>>, vector<1x1x64xf32>,
    %150 = vector.extract_strided_slice %6 {offsets = [4, 0], sizes = [1, 128], strides = [1, 1]} : vector<8x128xf32> to vector<1x128xf32>
    %cst_35 = arith.constant dense<0.000000e+00> : vector<1x128xf32>
    %151 = tpu.matmul %144, %7, %cst_35 {dimension_numbers = #tpu.dot_dimension_numbers<[1], [0], [0], [1], [0, 0, 1, 1], [], []>} : vector<1x32xf32>, vector<32x128xf32>, vector<1x128xf32> -> vector<1x128xf32>
    %152 = arith.addf %150, %151 : vector<1x128xf32>
    %153 = vector.extract_strided_slice %152 {offsets = [0, 0], sizes = [1, 32], strides = [1, 1]} : vector<1x128xf32> to vector<1x32xf32>
    %154 = arith.negf %153 : vector<1x32xf32>
    %155 = math.exp %154 : vector<1x32xf32>
    %cst_36 = arith.constant 1.000000e+00 : f32
    %156 = vector.broadcast %cst_36 : f32 to vector<1x32xf32>
    %157 = arith.addf %156, %155 : vector<1x32xf32>
    %158 = arith.divf %156, %157 : vector<1x32xf32>
    %159 = vector.extract_strided_slice %152 {offsets = [0, 32], sizes = [1, 32], strides = [1, 1]} : vector<1x128xf32> to vector<1x32xf32>
    %160 = arith.negf %159 : vector<1x32xf32>
    %161 = math.exp %160 : vector<1x32xf32>
    %cst_37 = arith.constant 1.000000e+00 : f32
    %162 = vector.broadcast %cst_37 : f32 to vector<1x32xf32>
    %163 = arith.addf %162, %161 : vector<1x32xf32>
    %164 = arith.divf %162, %163 : vector<1x32xf32>
    %165 = vector.extract_strided_slice %152 {offsets = [0, 64], sizes = [1, 32], strides = [1, 1]} : vector<1x128xf32> to vector<1x32xf32>
    %166 = math.tanh %165 : vector<1x32xf32>
    %167 = vector.extract_strided_slice %152 {offsets = [0, 96], sizes = [1, 32], strides = [1, 1]} : vector<1x128xf32> to vector<1x32xf32>
    %168 = arith.negf %167 : vector<1x32xf32>
    %169 = math.exp %168 : vector<1x32xf32>
    %cst_38 = arith.constant 1.000000e+00 : f32
    %170 = vector.broadcast %cst_38 : f32 to vector<1x32xf32>
    %171 = arith.addf %170, %169 : vector<1x32xf32>
    %172 = arith.divf %170, %171 : vector<1x32xf32>
    %173 = arith.mulf %164, %145 : vector<1x32xf32>
    %174 = arith.mulf %158, %166 : vector<1x32xf32>
    %175 = arith.addf %173, %174 : vector<1x32xf32>
    %176 = math.tanh %175 : vector<1x32xf32>
    %177 = arith.mulf %172, %176 : vector<1x32xf32>
    %c4_i32 = arith.constant 4 : i32
    %178 = arith.cmpi sgt, %0, %c4_i32 : i32
    %179 = arith.select %178, %177, %144 : vector<1x32xf32>
    %180 = arith.select %178, %175, %145 : vector<1x32xf32>
    %181 = tpu.concatenate %179, %180 in 1 : vector<1x32xf32>, vector<1x32xf32> -> vector<1x64xf32>
    %c4 = arith.constant 4 : index
    %c0_39 = arith.constant 0 : index
    %c0_40 = arith.constant 0 : index
    %182 = vector.load %arg4[%c4, %c0_39, %c0_40] : memref<8x1x64xf32, #tpu.memory_space<vmem>>, vector<1x1x64xf32>
    %183 = vector.shape_cast %182 : vector<1x1x64xf32> to vector<1x64xf32>
    %184 = vector.shape_cast %181 : vector<1x64xf32> to vector<1x1x64xf32>
    tpu.vector_store %arg4[%c4, %c0_39, %c0_40], %184 {strides = array<i32>} : memref<8x1x64xf32, #tpu.memory_space<vmem>>, vector<1x1x64xf32>,
    %185 = vector.extract_strided_slice %6 {offsets = [5, 0], sizes = [1, 128], strides = [1, 1]} : vector<8x128xf32> to vector<1x128xf32>
    %cst_41 = arith.constant dense<0.000000e+00> : vector<1x128xf32>
    %186 = tpu.matmul %179, %7, %cst_41 {dimension_numbers = #tpu.dot_dimension_numbers<[1], [0], [0], [1], [0, 0, 1, 1], [], []>} : vector<1x32xf32>, vector<32x128xf32>, vector<1x128xf32> -> vector<1x128xf32>
    %187 = arith.addf %185, %186 : vector<1x128xf32>
    %188 = vector.extract_strided_slice %187 {offsets = [0, 0], sizes = [1, 32], strides = [1, 1]} : vector<1x128xf32> to vector<1x32xf32>
    %189 = arith.negf %188 : vector<1x32xf32>
    %190 = math.exp %189 : vector<1x32xf32>
    %cst_42 = arith.constant 1.000000e+00 : f32
    %191 = vector.broadcast %cst_42 : f32 to vector<1x32xf32>
    %192 = arith.addf %191, %190 : vector<1x32xf32>
    %193 = arith.divf %191, %192 : vector<1x32xf32>
    %194 = vector.extract_strided_slice %187 {offsets = [0, 32], sizes = [1, 32], strides = [1, 1]} : vector<1x128xf32> to vector<1x32xf32>
    %195 = arith.negf %194 : vector<1x32xf32>
    %196 = math.exp %195 : vector<1x32xf32>
    %cst_43 = arith.constant 1.000000e+00 : f32
    %197 = vector.broadcast %cst_43 : f32 to vector<1x32xf32>
    %198 = arith.addf %197, %196 : vector<1x32xf32>
    %199 = arith.divf %197, %198 : vector<1x32xf32>
    %200 = vector.extract_strided_slice %187 {offsets = [0, 64], sizes = [1, 32], strides = [1, 1]} : vector<1x128xf32> to vector<1x32xf32>
    %201 = math.tanh %200 : vector<1x32xf32>
    %202 = vector.extract_strided_slice %187 {offsets = [0, 96], sizes = [1, 32], strides = [1, 1]} : vector<1x128xf32> to vector<1x32xf32>
    %203 = arith.negf %202 : vector<1x32xf32>
    %204 = math.exp %203 : vector<1x32xf32>
    %cst_44 = arith.constant 1.000000e+00 : f32
    %205 = vector.broadcast %cst_44 : f32 to vector<1x32xf32>
    %206 = arith.addf %205, %204 : vector<1x32xf32>
    %207 = arith.divf %205, %206 : vector<1x32xf32>
    %208 = arith.mulf %199, %180 : vector<1x32xf32>
    %209 = arith.mulf %193, %201 : vector<1x32xf32>
    %210 = arith.addf %208, %209 : vector<1x32xf32>
    %211 = math.tanh %210 : vector<1x32xf32>
    %212 = arith.mulf %207, %211 : vector<1x32xf32>
    %c5_i32 = arith.constant 5 : i32
    %213 = arith.cmpi sgt, %0, %c5_i32 : i32
    %214 = arith.select %213, %212, %179 : vector<1x32xf32>
    %215 = arith.select %213, %210, %180 : vector<1x32xf32>
    %216 = tpu.concatenate %214, %215 in 1 : vector<1x32xf32>, vector<1x32xf32> -> vector<1x64xf32>
    %c5 = arith.constant 5 : index
    %c0_45 = arith.constant 0 : index
    %c0_46 = arith.constant 0 : index
    %217 = vector.load %arg4[%c5, %c0_45, %c0_46] : memref<8x1x64xf32, #tpu.memory_space<vmem>>, vector<1x1x64xf32>
    %218 = vector.shape_cast %217 : vector<1x1x64xf32> to vector<1x64xf32>
    %219 = vector.shape_cast %216 : vector<1x64xf32> to vector<1x1x64xf32>
    tpu.vector_store %arg4[%c5, %c0_45, %c0_46], %219 {strides = array<i32>} : memref<8x1x64xf32, #tpu.memory_space<vmem>>, vector<1x1x64xf32>,
    %220 = vector.extract_strided_slice %6 {offsets = [6, 0], sizes = [1, 128], strides = [1, 1]} : vector<8x128xf32> to vector<1x128xf32>
    %cst_47 = arith.constant dense<0.000000e+00> : vector<1x128xf32>
    %221 = tpu.matmul %214, %7, %cst_47 {dimension_numbers = #tpu.dot_dimension_numbers<[1], [0], [0], [1], [0, 0, 1, 1], [], []>} : vector<1x32xf32>, vector<32x128xf32>, vector<1x128xf32> -> vector<1x128xf32>
    %222 = arith.addf %220, %221 : vector<1x128xf32>
    %223 = vector.extract_strided_slice %222 {offsets = [0, 0], sizes = [1, 32], strides = [1, 1]} : vector<1x128xf32> to vector<1x32xf32>
    %224 = arith.negf %223 : vector<1x32xf32>
    %225 = math.exp %224 : vector<1x32xf32>
    %cst_48 = arith.constant 1.000000e+00 : f32
    %226 = vector.broadcast %cst_48 : f32 to vector<1x32xf32>
    %227 = arith.addf %226, %225 : vector<1x32xf32>
    %228 = arith.divf %226, %227 : vector<1x32xf32>
    %229 = vector.extract_strided_slice %222 {offsets = [0, 32], sizes = [1, 32], strides = [1, 1]} : vector<1x128xf32> to vector<1x32xf32>
    %230 = arith.negf %229 : vector<1x32xf32>
    %231 = math.exp %230 : vector<1x32xf32>
    %cst_49 = arith.constant 1.000000e+00 : f32
    %232 = vector.broadcast %cst_49 : f32 to vector<1x32xf32>
    %233 = arith.addf %232, %231 : vector<1x32xf32>
    %234 = arith.divf %232, %233 : vector<1x32xf32>
    %235 = vector.extract_strided_slice %222 {offsets = [0, 64], sizes = [1, 32], strides = [1, 1]} : vector<1x128xf32> to vector<1x32xf32>
    %236 = math.tanh %235 : vector<1x32xf32>
    %237 = vector.extract_strided_slice %222 {offsets = [0, 96], sizes = [1, 32], strides = [1, 1]} : vector<1x128xf32> to vector<1x32xf32>
    %238 = arith.negf %237 : vector<1x32xf32>
    %239 = math.exp %238 : vector<1x32xf32>
    %cst_50 = arith.constant 1.000000e+00 : f32
    %240 = vector.broadcast %cst_50 : f32 to vector<1x32xf32>
    %241 = arith.addf %240, %239 : vector<1x32xf32>
    %242 = arith.divf %240, %241 : vector<1x32xf32>
    %243 = arith.mulf %234, %215 : vector<1x32xf32>
    %244 = arith.mulf %228, %236 : vector<1x32xf32>
    %245 = arith.addf %243, %244 : vector<1x32xf32>
    %246 = math.tanh %245 : vector<1x32xf32>
    %247 = arith.mulf %242, %246 : vector<1x32xf32>
    %c6_i32 = arith.constant 6 : i32
    %248 = arith.cmpi sgt, %0, %c6_i32 : i32
    %249 = arith.select %248, %247, %214 : vector<1x32xf32>
    %250 = arith.select %248, %245, %215 : vector<1x32xf32>
    %251 = tpu.concatenate %249, %250 in 1 : vector<1x32xf32>, vector<1x32xf32> -> vector<1x64xf32>
    %c6 = arith.constant 6 : index
    %c0_51 = arith.constant 0 : index
    %c0_52 = arith.constant 0 : index
    %252 = vector.load %arg4[%c6, %c0_51, %c0_52] : memref<8x1x64xf32, #tpu.memory_space<vmem>>, vector<1x1x64xf32>
    %253 = vector.shape_cast %252 : vector<1x1x64xf32> to vector<1x64xf32>
    %254 = vector.shape_cast %251 : vector<1x64xf32> to vector<1x1x64xf32>
    tpu.vector_store %arg4[%c6, %c0_51, %c0_52], %254 {strides = array<i32>} : memref<8x1x64xf32, #tpu.memory_space<vmem>>, vector<1x1x64xf32>,
    %255 = vector.extract_strided_slice %6 {offsets = [7, 0], sizes = [1, 128], strides = [1, 1]} : vector<8x128xf32> to vector<1x128xf32>
    %cst_53 = arith.constant dense<0.000000e+00> : vector<1x128xf32>
    %256 = tpu.matmul %249, %7, %cst_53 {dimension_numbers = #tpu.dot_dimension_numbers<[1], [0], [0], [1], [0, 0, 1, 1], [], []>} : vector<1x32xf32>, vector<32x128xf32>, vector<1x128xf32> -> vector<1x128xf32>
    %257 = arith.addf %255, %256 : vector<1x128xf32>
    %258 = vector.extract_strided_slice %257 {offsets = [0, 0], sizes = [1, 32], strides = [1, 1]} : vector<1x128xf32> to vector<1x32xf32>
    %259 = arith.negf %258 : vector<1x32xf32>
    %260 = math.exp %259 : vector<1x32xf32>
    %cst_54 = arith.constant 1.000000e+00 : f32
    %261 = vector.broadcast %cst_54 : f32 to vector<1x32xf32>
    %262 = arith.addf %261, %260 : vector<1x32xf32>
    %263 = arith.divf %261, %262 : vector<1x32xf32>
    %264 = vector.extract_strided_slice %257 {offsets = [0, 32], sizes = [1, 32], strides = [1, 1]} : vector<1x128xf32> to vector<1x32xf32>
    %265 = arith.negf %264 : vector<1x32xf32>
    %266 = math.exp %265 : vector<1x32xf32>
    %cst_55 = arith.constant 1.000000e+00 : f32
    %267 = vector.broadcast %cst_55 : f32 to vector<1x32xf32>
    %268 = arith.addf %267, %266 : vector<1x32xf32>
    %269 = arith.divf %267, %268 : vector<1x32xf32>
    %270 = vector.extract_strided_slice %257 {offsets = [0, 64], sizes = [1, 32], strides = [1, 1]} : vector<1x128xf32> to vector<1x32xf32>
    %271 = math.tanh %270 : vector<1x32xf32>
    %272 = vector.extract_strided_slice %257 {offsets = [0, 96], sizes = [1, 32], strides = [1, 1]} : vector<1x128xf32> to vector<1x32xf32>
    %273 = arith.negf %272 : vector<1x32xf32>
    %274 = math.exp %273 : vector<1x32xf32>
    %cst_56 = arith.constant 1.000000e+00 : f32
    %275 = vector.broadcast %cst_56 : f32 to vector<1x32xf32>
    %276 = arith.addf %275, %274 : vector<1x32xf32>
    %277 = arith.divf %275, %276 : vector<1x32xf32>
    %278 = arith.mulf %269, %250 : vector<1x32xf32>
    %279 = arith.mulf %263, %271 : vector<1x32xf32>
    %280 = arith.addf %278, %279 : vector<1x32xf32>
    %281 = math.tanh %280 : vector<1x32xf32>
    %282 = arith.mulf %277, %281 : vector<1x32xf32>
    %c7_i32 = arith.constant 7 : i32
    %283 = arith.cmpi sgt, %0, %c7_i32 : i32
    %284 = arith.select %283, %282, %249 : vector<1x32xf32>
    %285 = arith.select %283, %280, %250 : vector<1x32xf32>
    %286 = tpu.concatenate %284, %285 in 1 : vector<1x32xf32>, vector<1x32xf32> -> vector<1x64xf32>
    %c7 = arith.constant 7 : index
    %c0_57 = arith.constant 0 : index
    %c0_58 = arith.constant 0 : index
    %287 = vector.load %arg4[%c7, %c0_57, %c0_58] : memref<8x1x64xf32, #tpu.memory_space<vmem>>, vector<1x1x64xf32>
    %288 = vector.shape_cast %287 : vector<1x1x64xf32> to vector<1x64xf32>
    %289 = vector.shape_cast %286 : vector<1x64xf32> to vector<1x1x64xf32>
    tpu.vector_store %arg4[%c7, %c0_57, %c0_58], %289 {strides = array<i32>} : memref<8x1x64xf32, #tpu.memory_space<vmem>>, vector<1x1x64xf32>,
    return
  }
}

</mosaic_0001>

<llo_original>
// kernel: run.1
$region0: #{run.1}
  #allocation0 [shape = 'u32[]', space=smem, size = 0x4, offset = 0x4, fixed_abs, tag = 'smem constant byte address 0x4 - core index']
  #allocation1 [shape = 'u32[144,128]{1,0:T(1,128)}', space=vmem, size = 0x12000, scoped, tag = 'internal scratch']
  #allocation2 [shape = 's32[1]{0:T(128)S(6)}', space=smem, size = 0x200, scoped, tag = 'scoped memory for run.1']
  %s0 = inlined_call_operand.<no memory space> [shape: s32[1], index: 0, kind: input, shape index: {}]
  %s1 = inlined_call_operand.hbm [shape: f32[8,32], index: 1, kind: input, shape index: {}]
  %s2 = inlined_call_operand.hbm [shape: f32[72,128], index: 2, kind: input, shape index: {}]
  %s3 = inlined_call_operand.vmem [shape: f32[8,64], index: 3, kind: input, shape index: {}]
  %s4 = inlined_call_operand.hbm [shape: f32[8,1,64], index: 4, kind: output, shape index: {}]
  %s5 = sld [smem:[#allocation0]]
  $region34: #{run.1} parent=0
    _
  %s7 = ssub.s32 1, %s5
  %s8 = scalar_select 0, %s7, %s5
  %9 = sst [smem:[#allocation2]] %s0
  $region1: #{run.1} parent=0
    #allocation3 [shape = 'u8[4096]{0}', space=vmem, size = 0x1000, scoped, tag = 'input window, operand 1, single buffered']
    #allocation4 [shape = 's32[1]{0}', space=sflag, size = 0x4, scoped, tag = 'scoped memory for run.1']
    #allocation5 [shape = 's32[1]{0}', space=sflag, size = 0x4, scoped, tag = 'scoped memory for run.1']
    #allocation6 [shape = 'u8[36864]{0}', space=vmem, size = 0x9000, scoped, tag = 'input window, operand 2, single buffered']
    #allocation7 [shape = 's32[1]{0}', space=sflag, size = 0x4, scoped, tag = 'scoped memory for run.1']
    #allocation8 [shape = 'u8[4096]{0}', space=vmem, size = 0x1000, scoped, tag = 'output window, operand 0, single buffered']
    %10 = vsyncpa [#allocation4], 0
    %11 = vsyncpa [#allocation7], 0
    %12 = vsyncpa [#allocation5], 0
    // Predicated region
    $region2: #{run.1} parent=1 // pred_check
      _
    $region3: #{run.1} parent=1 // pred_check_branch
      %14 = sbr.rel (0) target = $region5
    $region4: #{run.1} parent=1 // pred_region
      _
    $region5: #{run.1} parent=1 // pred_fallthru
      _
    // Predicated region
    $region6: #{run.1} parent=1 // pred_check
      _
    $region7: #{run.1} parent=1 // pred_check_branch
      %16 = sbr.rel (0) target = $region9
    $region8: #{run.1} parent=1 // pred_region
      %s18 = ssub.s32 128, 128
      %19 = vsyncadd [#allocation4], %s18
      %s21 = sshll.u32 [#allocation3], 4
      %s22 = int_to_ptr.vmem [resolvable:$true] %s21
      %24 = dma.hbm_to_vmem [thread:$0]  %s1, 128, %s22, [#allocation4]
    $region9: #{run.1} parent=1 // pred_fallthru
      _
    // Predicated region
    $region10: #{run.1} parent=1 // pred_check
      _
    $region11: #{run.1} parent=1 // pred_check_branch
      %26 = sbr.rel (0) target = $region13
    $region12: #{run.1} parent=1 // pred_region
      %s28 = ssub.s32 1152, 1152
      %29 = vsyncadd [#allocation7], %s28
      %s30 = sshll.u32 [#allocation6], 4
      %s31 = int_to_ptr.vmem [resolvable:$true] %s30
      %36 = dma.hbm_to_vmem [thread:$0]  %s2, 1152, %s31, [#allocation7], 128, 128, 8
    $region13: #{run.1} parent=1 // pred_fallthru
      _
    // Predicated region
    $region14: #{run.1} parent=1 // pred_check
      _
    $region15: #{run.1} parent=1 // pred_check_branch
      %38 = sbr.rel (0) target = $region17
    $region16: #{run.1} parent=1 // pred_region
      _
    $region17: #{run.1} parent=1 // pred_fallthru
      _
    // Predicated region
    $region18: #{run.1} parent=1 // pred_check
      _
    $region19: #{run.1} parent=1 // pred_check_branch
      %40 = sbr.rel (0) target = $region21
    $region20: #{run.1} parent=1 // pred_region
      %41 = dma.done [#allocation4], 128
    $region21: #{run.1} parent=1 // pred_fallthru
      _
    // Predicated region
    $region22: #{run.1} parent=1 // pred_check
      _
    $region23: #{run.1} parent=1 // pred_check_branch
      %43 = sbr.rel (0) target = $region25
    $region24: #{run.1} parent=1 // pred_region
      %44 = dma.done [#allocation7], 1152
    $region25: #{run.1} parent=1 // pred_fallthru
      _
    %s45 = sld [smem:[#allocation2]]
    %v46 = vld [vmem:[#allocation3] sm:$0xff]
    %v47 = vld [vmem:[#allocation6] sm:$0xff]
    %v48 = vld [vmem:[#allocation6 + $0x8] sm:$0xff]
    %v49 = vld [vmem:[#allocation6 + $0x10] sm:$0xff]
    %v50 = vld [vmem:[#allocation6 + $0x18] sm:$0xff]
    %v51 = vld [vmem:[#allocation6 + $0x40] sm:$0x1]
    %v52 = vlaneseq
    %v53 = vshrl.u32 %v52, 7
    %v54 = vsub.s32 0, %v53
    %v55 = vrot.slane %v51, %v54
    %vm56 = vcmask 261120
    %v58 = vsel %vm56, %v46, 0
    %60 = vmatprep.subr.mxu0 0.0
    %61 = vmatpush1.msra.mxu0 %v47
    %62 = vmatprep.subr.mxu0 0.0
    %63 = vmatpush1.msra.mxu0 %v48
    %64 = vmatprep.subr.mxu0 0.0
    %65 = vmatpush1.msra.mxu0 %v49
    %66 = vmatprep.subr.mxu0 0.0
    %67 = vmatpush1.msra.mxu0 %v50
    %68 = vmatprep.subr.mxu0 0.0
    %69 = vmatpush1.msra.mxu0 0.0
    %70 = vmatprep.subr.mxu0 0.0
    %71 = vmatpush1.msra.mxu0 0.0
    %72 = vmatprep.subr.mxu0 0.0
    %73 = vmatpush1.msra.mxu0 0.0
    %74 = vmatprep.subr.mxu0 0.0
    %75 = vmatpush1.msra.mxu0 0.0
    %76 = vmatprep.subr.mxu0 0.0
    %77 = vmatpush1.msra.mxu0 0.0
    %78 = vmatprep.subr.mxu0 0.0
    %79 = vmatpush1.msra.mxu0 0.0
    %80 = vmatprep.subr.mxu0 0.0
    %81 = vmatpush1.msra.mxu0 0.0
    %82 = vmatprep.subr.mxu0 0.0
    %83 = vmatpush1.msra.mxu0 0.0
    %84 = vmatprep.subr.mxu0 0.0
    %85 = vmatpush1.msra.mxu0 0.0
    %86 = vmatprep.subr.mxu0 0.0
    %87 = vmatpush1.msra.mxu0 0.0
    %88 = vmatprep.subr.mxu0 0.0
    %89 = vmatpush1.msra.mxu0 0.0
    %90 = vmatprep.subr.mxu0 0.0
    %91 = vmatpush1.msra.mxu0 0.0
    %92 = vmatprep.subr.mxu0 0.0
    %93 = vmatpush1.msra.mxu0 0.0
    %94 = vmatprep.subr.mxu0 0.0
    %95 = vmatpush1.msra.mxu0 0.0
    %96 = vmatprep.subr.mxu0 0.0
    %97 = vmatpush1.msra.mxu0 0.0
    %98 = vmatprep.subr.mxu0 0.0
    %99 = vmatpush1.msra.mxu0 0.0
    %100 = vmatprep.subr.mxu0 0.0
    %101 = vmatpush1.msra.mxu0 0.0
    %102 = vmatprep.subr.mxu0 0.0
    %103 = vmatpush1.msra.mxu0 0.0
    %104 = vmatprep.subr.mxu0 0.0
    %105 = vmatpush1.msra.mxu0 0.0
    %106 = vmatprep.subr.mxu0 0.0
    %107 = vmatpush1.msra.mxu0 0.0
    %108 = vmatprep.subr.mxu0 0.0
    %109 = vmatpush1.msra.mxu0 0.0
    %110 = vmatprep.subr.mxu0 0.0
    %111 = vmatpush1.msra.mxu0 0.0
    %112 = vmatprep.subr.mxu0 0.0
    %113 = vmatpush1.msra.mxu0 0.0
    %114 = vmatprep.subr.mxu0 0.0
    %115 = vmatpush1.msra.mxu0 0.0
    %116 = vmatprep.subr.mxu0 0.0
    %117 = vmatpush1.msra.mxu0 0.0
    %118 = vmatprep.subr.mxu0 0.0
    %119 = vmatpush1.msra.mxu0 0.0
    %120 = vmatprep.subr.mxu0 0.0
    %121 = vmatpush1.msra.mxu0 0.0
    %122 = vmatprep.subr.mxu0 0.0
    %123 = vmatpush1.msra.mxu0 0.0
    %124 = vmatprep.mubr.f32.mxu0 0.0
    %125 = vmatmul.mubr.f32.gmra.mrb[0].mxu0 %v58
    %v126 = vpop.f32.mrb[0].mxu0
    %v127 = vadd.f32 %v55, %v126
    %v128 = vpop.f32.mrb[0].mxu0
    %129 = vdwg.mxu0
    %v130 = vld [vmem:[#allocation6 + $0x20] sm:$0xff]
    %v131 = vld [vmem:[#allocation6 + $0x28] sm:$0xff]
    %v132 = vld [vmem:[#allocation6 + $0x30] sm:$0xff]
    %v133 = vld [vmem:[#allocation6 + $0x38] sm:$0xff]
    %v134 = vld [vmem:[%s3] sm:$0x1]
    %v136 = vsel %vm56, %v134, 0
    %138 = vmatprep.subr.mxu0 0.0
    %139 = vmatpush1.msra.mxu0 %v130
    %140 = vmatprep.subr.mxu0 0.0
    %141 = vmatpush1.msra.mxu0 %v131
    %142 = vmatprep.subr.mxu0 0.0
    %143 = vmatpush1.msra.mxu0 %v132
    %144 = vmatprep.subr.mxu0 0.0
    %145 = vmatpush1.msra.mxu0 %v133
    %146 = vmatprep.subr.mxu0 0.0
    %147 = vmatpush1.msra.mxu0 0.0
    %148 = vmatprep.subr.mxu0 0.0
    %149 = vmatpush1.msra.mxu0 0.0
    %150 = vmatprep.subr.mxu0 0.0
    %151 = vmatpush1.msra.mxu0 0.0
    %152 = vmatprep.subr.mxu0 0.0
    %153 = vmatpush1.msra.mxu0 0.0
    %154 = vmatprep.subr.mxu0 0.0
    %155 = vmatpush1.msra.mxu0 0.0
    %156 = vmatprep.subr.mxu0 0.0
    %157 = vmatpush1.msra.mxu0 0.0
    %158 = vmatprep.subr.mxu0 0.0
    %159 = vmatpush1.msra.mxu0 0.0
    %160 = vmatprep.subr.mxu0 0.0
    %161 = vmatpush1.msra.mxu0 0.0
    %162 = vmatprep.subr.mxu0 0.0
    %163 = vmatpush1.msra.mxu0 0.0
    %164 = vmatprep.subr.mxu0 0.0
    %165 = vmatpush1.msra.mxu0 0.0
    %166 = vmatprep.subr.mxu0 0.0
    %167 = vmatpush1.msra.mxu0 0.0
    %168 = vmatprep.subr.mxu0 0.0
    %169 = vmatpush1.msra.mxu0 0.0
    %170 = vmatprep.subr.mxu0 0.0
    %171 = vmatpush1.msra.mxu0 0.0
    %172 = vmatprep.subr.mxu0 0.0
    %173 = vmatpush1.msra.mxu0 0.0
    %174 = vmatprep.subr.mxu0 0.0
    %175 = vmatpush1.msra.mxu0 0.0
    %176 = vmatprep.subr.mxu0 0.0
    %177 = vmatpush1.msra.mxu0 0.0
    %178 = vmatprep.subr.mxu0 0.0
    %179 = vmatpush1.msra.mxu0 0.0
    %180 = vmatprep.subr.mxu0 0.0
    %181 = vmatpush1.msra.mxu0 0.0
    %182 = vmatprep.subr.mxu0 0.0
    %183 = vmatpush1.msra.mxu0 0.0
    %184 = vmatprep.subr.mxu0 0.0
    %185 = vmatpush1.msra.mxu0 0.0
    %186 = vmatprep.subr.mxu0 0.0
    %187 = vmatpush1.msra.mxu0 0.0
    %188 = vmatprep.subr.mxu0 0.0
    %189 = vmatpush1.msra.mxu0 0.0
    %190 = vmatprep.subr.mxu0 0.0
    %191 = vmatpush1.msra.mxu0 0.0
    %192 = vmatprep.subr.mxu0 0.0
    %193 = vmatpush1.msra.mxu0 0.0
    %194 = vmatprep.subr.mxu0 0.0
    %195 = vmatpush1.msra.mxu0 0.0
    %196 = vmatprep.subr.mxu0 0.0
    %197 = vmatpush1.msra.mxu0 0.0
    %198 = vmatprep.subr.mxu0 0.0
    %199 = vmatpush1.msra.mxu0 0.0
    %200 = vmatprep.subr.mxu0 0.0
    %201 = vmatpush1.msra.mxu0 0.0
    %202 = vmatprep.mubr.f32.mxu0 0.0
    %203 = vmatmul.mubr.f32.gmra.mrb[0].mxu0 %v136
    %v204 = vpop.f32.mrb[0].mxu0
    %v205 = vadd.f32 0.0, %v204
    %v206 = vpop.f32.mrb[0].mxu0
    %207 = vdwg.mxu0
    %v208 = vadd.f32 %v127, %v205
    %v209 = vxor.u32 %v208, 2147483648
    %v210 = vmul.f32 %v209, 1.442695
    %v211 = vpow.pop %v210
    %v212 = vadd.f32 %v211, 1.0
    %v213 = vrcp.pop %v212
    %v214 = vmul.f32 1.0, %v213
    %v215 = vtanh.pop %v208
    %v216 = vmul.f32 %v214, %v134
    %218 = vrot.lane.b32.xlu0 %v215, 64
    %v219 = vpop.permute.xlu0 %218
    %v221 = vmul.f32 %v214, %v219
    %223 = vrot.lane.b32.xlu0 %v221, 32
    %v224 = vpop.permute.xlu0 %223
    %v226 = vadd.f32 %v216, %v224
    %v227 = vtanh.pop %v226
    %229 = vrot.lane.b32.xlu0 %v227, 64
    %v230 = vpop.permute.xlu0 %229
    %v232 = vmul.f32 %v214, %v230
    %p233 = scmp.gt.s32.totalorder %s45, 0
    %s234 = scalar_select %p233, 1, 0
    %v235 = vstv %s234
    %vm236 = vcmp.eq.s32.totalorder %v235, 1
    %237 = vrot.lane.b32.xlu0 %v134, 96
    %v238 = vpop.permute.xlu0 %237
    %v240 = vsel %vm236, %v232, %v238
    %v241 = vsel %vm236, %v226, %v134
    %243 = vrot.lane.b32.xlu0 %v240, 32
    %v244 = vpop.permute.xlu0 %243
    %v246 = vsel %vm56, %v244, %v241
    %vm247 = vcmask 516096
    %248 = vst.msk [vmem:[#allocation8] sm:$0x1] %vm247, %v246
    %v249 = vsel %vm56, %v244, 0
    %251 = vmatprep.subr.mxu0 0.0
    %252 = vmatpush1.msra.mxu0 %v130
    %253 = vmatprep.subr.mxu0 0.0
    %254 = vmatpush1.msra.mxu0 %v131
    %255 = vmatprep.subr.mxu0 0.0
    %256 = vmatpush1.msra.mxu0 %v132
    %257 = vmatprep.subr.mxu0 0.0
    %258 = vmatpush1.msra.mxu0 %v133
    %259 = vmatprep.subr.mxu0 0.0
    %260 = vmatpush1.msra.mxu0 0.0
    %261 = vmatprep.subr.mxu0 0.0
    %262 = vmatpush1.msra.mxu0 0.0
    %263 = vmatprep.subr.mxu0 0.0
    %264 = vmatpush1.msra.mxu0 0.0
    %265 = vmatprep.subr.mxu0 0.0
    %266 = vmatpush1.msra.mxu0 0.0
    %267 = vmatprep.subr.mxu0 0.0
    %268 = vmatpush1.msra.mxu0 0.0
    %269 = vmatprep.subr.mxu0 0.0
    %270 = vmatpush1.msra.mxu0 0.0
    %271 = vmatprep.subr.mxu0 0.0
    %272 = vmatpush1.msra.mxu0 0.0
    %273 = vmatprep.subr.mxu0 0.0
    %274 = vmatpush1.msra.mxu0 0.0
    %275 = vmatprep.subr.mxu0 0.0
    %276 = vmatpush1.msra.mxu0 0.0
    %277 = vmatprep.subr.mxu0 0.0
    %278 = vmatpush1.msra.mxu0 0.0
    %279 = vmatprep.subr.mxu0 0.0
    %280 = vmatpush1.msra.mxu0 0.0
    %281 = vmatprep.subr.mxu0 0.0
    %282 = vmatpush1.msra.mxu0 0.0
    %283 = vmatprep.subr.mxu0 0.0
    %284 = vmatpush1.msra.mxu0 0.0
    %285 = vmatprep.subr.mxu0 0.0
    %286 = vmatpush1.msra.mxu0 0.0
    %287 = vmatprep.subr.mxu0 0.0
    %288 = vmatpush1.msra.mxu0 0.0
    %289 = vmatprep.subr.mxu0 0.0
    %290 = vmatpush1.msra.mxu0 0.0
    %291 = vmatprep.subr.mxu0 0.0
    %292 = vmatpush1.msra.mxu0 0.0
    %293 = vmatprep.subr.mxu0 0.0
    %294 = vmatpush1.msra.mxu0 0.0
    %295 = vmatprep.subr.mxu0 0.0
    %296 = vmatpush1.msra.mxu0 0.0
    %297 = vmatprep.subr.mxu0 0.0
    %298 = vmatpush1.msra.mxu0 0.0
    %299 = vmatprep.subr.mxu0 0.0
    %300 = vmatpush1.msra.mxu0 0.0
    %301 = vmatprep.subr.mxu0 0.0
    %302 = vmatpush1.msra.mxu0 0.0
    %303 = vmatprep.subr.mxu0 0.0
    %304 = vmatpush1.msra.mxu0 0.0
    %305 = vmatprep.subr.mxu0 0.0
    %306 = vmatpush1.msra.mxu0 0.0
    %307 = vmatprep.subr.mxu0 0.0
    %308 = vmatpush1.msra.mxu0 0.0
    %309 = vmatprep.subr.mxu0 0.0
    %310 = vmatpush1.msra.mxu0 0.0
    %311 = vmatprep.subr.mxu0 0.0
    %312 = vmatpush1.msra.mxu0 0.0
    %313 = vmatprep.subr.mxu0 0.0
    %314 = vmatpush1.msra.mxu0 0.0
    %315 = vmatprep.mubr.f32.mxu0 0.0
    %316 = vmatmul.mubr.f32.gmra.mrb[0].mxu0 %v249
    %v317 = vpop.f32.mrb[0].mxu0
    %v318 = vadd.f32 0.0, %v317
    %v319 = vpop.f32.mrb[0].mxu0
    %320 = vdwg.mxu0
    %v322 = vrot.slane %v318, 7
    %v324 = vadd.f32 %v127, %v322
    %v325 = vxor.u32 %v324, 2147483648
    %v326 = vmul.f32 %v325, 1.442695
    %v327 = vpow.pop %v326
    %v328 = vadd.f32 %v327, 1.0
    %v329 = vrcp.pop %v328
    %v330 = vmul.f32 1.0, %v329
    %v331 = vtanh.pop %v324
    %v333 = vrot.slane %v241, 7
    %v335 = vmul.f32 %v330, %v333
    %337 = vrot.lane.b32.xlu0 %v331, 64
    %v338 = vpop.permute.xlu0 %337
    %v340 = vmul.f32 %v330, %v338
    %342 = vrot.lane.b32.xlu0 %v340, 32
    %v343 = vpop.permute.xlu0 %342
    %v345 = vadd.f32 %v335, %v343
    %v346 = vtanh.pop %v345
    %348 = vrot.lane.b32.xlu0 %v346, 64
    %v349 = vpop.permute.xlu0 %348
    %v351 = vmul.f32 %v330, %v349
    %p352 = scmp.gt.s32.totalorder %s45, 1
    %s353 = scalar_select %p352, 1, 0
    %v354 = vstv %s353
    %vm355 = vcmp.eq.s32.totalorder %v354, 1
    %v356 = vrot.slane %v240, 7
    %v358 = vsel %vm355, %v351, %v356
    %v359 = vsel %vm355, %v345, %v333
    %361 = vrot.lane.b32.xlu0 %v358, 32
    %v362 = vpop.permute.xlu0 %361
    %v364 = vsel %vm56, %v362, %v359
    %s365 = scalar_lea.vmem [#allocation8], 1
    %vm366 = vcmask 517121
    %367 = vst.msk [vmem:[%s365 - $0x1] sm:$0x2] %vm366, %v364
    %v368 = vrot.slane %v358, 1
    %369 = vrot.lane.b32.xlu0 %v368, 32
    %v370 = vpop.permute.xlu0 %369
    %v371 = vsel %vm56, %v370, 0
    %373 = vmatprep.subr.mxu0 0.0
    %374 = vmatpush1.msra.mxu0 %v130
    %375 = vmatprep.subr.mxu0 0.0
    %376 = vmatpush1.msra.mxu0 %v131
    %377 = vmatprep.subr.mxu0 0.0
    %378 = vmatpush1.msra.mxu0 %v132
    %379 = vmatprep.subr.mxu0 0.0
    %380 = vmatpush1.msra.mxu0 %v133
    %381 = vmatprep.subr.mxu0 0.0
    %382 = vmatpush1.msra.mxu0 0.0
    %383 = vmatprep.subr.mxu0 0.0
    %384 = vmatpush1.msra.mxu0 0.0
    %385 = vmatprep.subr.mxu0 0.0
    %386 = vmatpush1.msra.mxu0 0.0
    %387 = vmatprep.subr.mxu0 0.0
    %388 = vmatpush1.msra.mxu0 0.0
    %389 = vmatprep.subr.mxu0 0.0
    %390 = vmatpush1.msra.mxu0 0.0
    %391 = vmatprep.subr.mxu0 0.0
    %392 = vmatpush1.msra.mxu0 0.0
    %393 = vmatprep.subr.mxu0 0.0
    %394 = vmatpush1.msra.mxu0 0.0
    %395 = vmatprep.subr.mxu0 0.0
    %396 = vmatpush1.msra.mxu0 0.0
    %397 = vmatprep.subr.mxu0 0.0
    %398 = vmatpush1.msra.mxu0 0.0
    %399 = vmatprep.subr.mxu0 0.0
    %400 = vmatpush1.msra.mxu0 0.0
    %401 = vmatprep.subr.mxu0 0.0
    %402 = vmatpush1.msra.mxu0 0.0
    %403 = vmatprep.subr.mxu0 0.0
    %404 = vmatpush1.msra.mxu0 0.0
    %405 = vmatprep.subr.mxu0 0.0
    %406 = vmatpush1.msra.mxu0 0.0
    %407 = vmatprep.subr.mxu0 0.0
    %408 = vmatpush1.msra.mxu0 0.0
    %409 = vmatprep.subr.mxu0 0.0
    %410 = vmatpush1.msra.mxu0 0.0
    %411 = vmatprep.subr.mxu0 0.0
    %412 = vmatpush1.msra.mxu0 0.0
    %413 = vmatprep.subr.mxu0 0.0
    %414 = vmatpush1.msra.mxu0 0.0
    %415 = vmatprep.subr.mxu0 0.0
    %416 = vmatpush1.msra.mxu0 0.0
    %417 = vmatprep.subr.mxu0 0.0
    %418 = vmatpush1.msra.mxu0 0.0
    %419 = vmatprep.subr.mxu0 0.0
    %420 = vmatpush1.msra.mxu0 0.0
    %421 = vmatprep.subr.mxu0 0.0
    %422 = vmatpush1.msra.mxu0 0.0
    %423 = vmatprep.subr.mxu0 0.0
    %424 = vmatpush1.msra.mxu0 0.0
    %425 = vmatprep.subr.mxu0 0.0
    %426 = vmatpush1.msra.mxu0 0.0
    %427 = vmatprep.subr.mxu0 0.0
    %428 = vmatpush1.msra.mxu0 0.0
    %429 = vmatprep.subr.mxu0 0.0
    %430 = vmatpush1.msra.mxu0 0.0
    %431 = vmatprep.subr.mxu0 0.0
    %432 = vmatpush1.msra.mxu0 0.0
    %433 = vmatprep.subr.mxu0 0.0
    %434 = vmatpush1.msra.mxu0 0.0
    %435 = vmatprep.subr.mxu0 0.0
    %436 = vmatpush1.msra.mxu0 0.0
    %437 = vmatprep.mubr.f32.mxu0 0.0
    %438 = vmatmul.mubr.f32.gmra.mrb[0].mxu0 %v371
    %v439 = vpop.f32.mrb[0].mxu0
    %v440 = vadd.f32 0.0, %v439
    %v441 = vpop.f32.mrb[0].mxu0
    %442 = vdwg.mxu0
    %v444 = vrot.slane %v440, 6
    %v446 = vadd.f32 %v127, %v444
    %v447 = vxor.u32 %v446, 2147483648
    %v448 = vmul.f32 %v447, 1.442695
    %v449 = vpow.pop %v448
    %v450 = vadd.f32 %v449, 1.0
    %v451 = vrcp.pop %v450
    %v452 = vmul.f32 1.0, %v451
    %v453 = vtanh.pop %v446
    %v455 = vrot.slane %v359, 7
    %v457 = vmul.f32 %v452, %v455
    %459 = vrot.lane.b32.xlu0 %v453, 64
    %v460 = vpop.permute.xlu0 %459
    %v462 = vmul.f32 %v452, %v460
    %464 = vrot.lane.b32.xlu0 %v462, 32
    %v465 = vpop.permute.xlu0 %464
    %v467 = vadd.f32 %v457, %v465
    %v468 = vtanh.pop %v467
    %470 = vrot.lane.b32.xlu0 %v468, 64
    %v471 = vpop.permute.xlu0 %470
    %v473 = vmul.f32 %v452, %v471
    %p474 = scmp.gt.s32.totalorder %s45, 2
    %s475 = scalar_select %p474, 1, 0
    %v476 = vstv %s475
    %vm477 = vcmp.eq.s32.totalorder %v476, 1
    %v478 = vrot.slane %v358, 7
    %v480 = vsel %vm477, %v473, %v478
    %v481 = vsel %vm477, %v467, %v455
    %483 = vrot.lane.b32.xlu0 %v480, 32
    %v484 = vpop.permute.xlu0 %483
    %v486 = vsel %vm56, %v484, %v481
    %s487 = scalar_lea.vmem [#allocation8], 2
    %vm488 = vcmask 518146
    %489 = vst.msk [vmem:[%s487 - $0x2] sm:$0x4] %vm488, %v486
    %v490 = vrot.slane %v480, 2
    %491 = vrot.lane.b32.xlu0 %v490, 32
    %v492 = vpop.permute.xlu0 %491
    %v493 = vsel %vm56, %v492, 0
    %495 = vmatprep.subr.mxu0 0.0
    %496 = vmatpush1.msra.mxu0 %v130
    %497 = vmatprep.subr.mxu0 0.0
    %498 = vmatpush1.msra.mxu0 %v131
    %499 = vmatprep.subr.mxu0 0.0
    %500 = vmatpush1.msra.mxu0 %v132
    %501 = vmatprep.subr.mxu0 0.0
    %502 = vmatpush1.msra.mxu0 %v133
    %503 = vmatprep.subr.mxu0 0.0
    %504 = vmatpush1.msra.mxu0 0.0
    %505 = vmatprep.subr.mxu0 0.0
    %506 = vmatpush1.msra.mxu0 0.0
    %507 = vmatprep.subr.mxu0 0.0
    %508 = vmatpush1.msra.mxu0 0.0
    %509 = vmatprep.subr.mxu0 0.0
    %510 = vmatpush1.msra.mxu0 0.0
    %511 = vmatprep.subr.mxu0 0.0
    %512 = vmatpush1.msra.mxu0 0.0
    %513 = vmatprep.subr.mxu0 0.0
    %514 = vmatpush1.msra.mxu0 0.0
    %515 = vmatprep.subr.mxu0 0.0
    %516 = vmatpush1.msra.mxu0 0.0
    %517 = vmatprep.subr.mxu0 0.0
    %518 = vmatpush1.msra.mxu0 0.0
    %519 = vmatprep.subr.mxu0 0.0
    %520 = vmatpush1.msra.mxu0 0.0
    %521 = vmatprep.subr.mxu0 0.0
    %522 = vmatpush1.msra.mxu0 0.0
    %523 = vmatprep.subr.mxu0 0.0
    %524 = vmatpush1.msra.mxu0 0.0
    %525 = vmatprep.subr.mxu0 0.0
    %526 = vmatpush1.msra.mxu0 0.0
    %527 = vmatprep.subr.mxu0 0.0
    %528 = vmatpush1.msra.mxu0 0.0
    %529 = vmatprep.subr.mxu0 0.0
    %530 = vmatpush1.msra.mxu0 0.0
    %531 = vmatprep.subr.mxu0 0.0
    %532 = vmatpush1.msra.mxu0 0.0
    %533 = vmatprep.subr.mxu0 0.0
    %534 = vmatpush1.msra.mxu0 0.0
    %535 = vmatprep.subr.mxu0 0.0
    %536 = vmatpush1.msra.mxu0 0.0
    %537 = vmatprep.subr.mxu0 0.0
    %538 = vmatpush1.msra.mxu0 0.0
    %539 = vmatprep.subr.mxu0 0.0
    %540 = vmatpush1.msra.mxu0 0.0
    %541 = vmatprep.subr.mxu0 0.0
    %542 = vmatpush1.msra.mxu0 0.0
    %543 = vmatprep.subr.mxu0 0.0
    %544 = vmatpush1.msra.mxu0 0.0
    %545 = vmatprep.subr.mxu0 0.0
    %546 = vmatpush1.msra.mxu0 0.0
    %547 = vmatprep.subr.mxu0 0.0
    %548 = vmatpush1.msra.mxu0 0.0
    %549 = vmatprep.subr.mxu0 0.0
    %550 = vmatpush1.msra.mxu0 0.0
    %551 = vmatprep.subr.mxu0 0.0
    %552 = vmatpush1.msra.mxu0 0.0
    %553 = vmatprep.subr.mxu0 0.0
    %554 = vmatpush1.msra.mxu0 0.0
    %555 = vmatprep.subr.mxu0 0.0
    %556 = vmatpush1.msra.mxu0 0.0
    %557 = vmatprep.subr.mxu0 0.0
    %558 = vmatpush1.msra.mxu0 0.0
    %559 = vmatprep.mubr.f32.mxu0 0.0
    %560 = vmatmul.mubr.f32.gmra.mrb[0].mxu0 %v493
    %v561 = vpop.f32.mrb[0].mxu0
    %v562 = vadd.f32 0.0, %v561
    %v563 = vpop.f32.mrb[0].mxu0
    %564 = vdwg.mxu0
    %v566 = vrot.slane %v562, 5
    %v568 = vadd.f32 %v127, %v566
    %v569 = vxor.u32 %v568, 2147483648
    %v570 = vmul.f32 %v569, 1.442695
    %v571 = vpow.pop %v570
    %v572 = vadd.f32 %v571, 1.0
    %v573 = vrcp.pop %v572
    %v574 = vmul.f32 1.0, %v573
    %v575 = vtanh.pop %v568
    %v577 = vrot.slane %v481, 7
    %v579 = vmul.f32 %v574, %v577
    %581 = vrot.lane.b32.xlu0 %v575, 64
    %v582 = vpop.permute.xlu0 %581
    %v584 = vmul.f32 %v574, %v582
    %586 = vrot.lane.b32.xlu0 %v584, 32
    %v587 = vpop.permute.xlu0 %586
    %v589 = vadd.f32 %v579, %v587
    %v590 = vtanh.pop %v589
    %592 = vrot.lane.b32.xlu0 %v590, 64
    %v593 = vpop.permute.xlu0 %592
    %v595 = vmul.f32 %v574, %v593
    %p596 = scmp.gt.s32.totalorder %s45, 3
    %s597 = scalar_select %p596, 1, 0
    %v598 = vstv %s597
    %vm599 = vcmp.eq.s32.totalorder %v598, 1
    %v600 = vrot.slane %v480, 7
    %v602 = vsel %vm599, %v595, %v600
    %v603 = vsel %vm599, %v589, %v577
    %605 = vrot.lane.b32.xlu0 %v602, 32
    %v606 = vpop.permute.xlu0 %605
    %v608 = vsel %vm56, %v606, %v603
    %s609 = scalar_lea.vmem [#allocation8], 3
    %vm610 = vcmask 519171
    %611 = vst.msk [vmem:[%s609 - $0x3] sm:$0x8] %vm610, %v608
    %v612 = vrot.slane %v602, 3
    %613 = vrot.lane.b32.xlu0 %v612, 32
    %v614 = vpop.permute.xlu0 %613
    %v615 = vsel %vm56, %v614, 0
    %617 = vmatprep.subr.mxu0 0.0
    %618 = vmatpush1.msra.mxu0 %v130
    %619 = vmatprep.subr.mxu0 0.0
    %620 = vmatpush1.msra.mxu0 %v131
    %621 = vmatprep.subr.mxu0 0.0
    %622 = vmatpush1.msra.mxu0 %v132
    %623 = vmatprep.subr.mxu0 0.0
    %624 = vmatpush1.msra.mxu0 %v133
    %625 = vmatprep.subr.mxu0 0.0
    %626 = vmatpush1.msra.mxu0 0.0
    %627 = vmatprep.subr.mxu0 0.0
    %628 = vmatpush1.msra.mxu0 0.0
    %629 = vmatprep.subr.mxu0 0.0
    %630 = vmatpush1.msra.mxu0 0.0
    %631 = vmatprep.subr.mxu0 0.0
    %632 = vmatpush1.msra.mxu0 0.0
    %633 = vmatprep.subr.mxu0 0.0
    %634 = vmatpush1.msra.mxu0 0.0
    %635 = vmatprep.subr.mxu0 0.0
    %636 = vmatpush1.msra.mxu0 0.0
    %637 = vmatprep.subr.mxu0 0.0
    %638 = vmatpush1.msra.mxu0 0.0
    %639 = vmatprep.subr.mxu0 0.0
    %640 = vmatpush1.msra.mxu0 0.0
    %641 = vmatprep.subr.mxu0 0.0
    %642 = vmatpush1.msra.mxu0 0.0
    %643 = vmatprep.subr.mxu0 0.0
    %644 = vmatpush1.msra.mxu0 0.0
    %645 = vmatprep.subr.mxu0 0.0
    %646 = vmatpush1.msra.mxu0 0.0
    %647 = vmatprep.subr.mxu0 0.0
    %648 = vmatpush1.msra.mxu0 0.0
    %649 = vmatprep.subr.mxu0 0.0
    %650 = vmatpush1.msra.mxu0 0.0
    %651 = vmatprep.subr.mxu0 0.0
    %652 = vmatpush1.msra.mxu0 0.0
    %653 = vmatprep.subr.mxu0 0.0
    %654 = vmatpush1.msra.mxu0 0.0
    %655 = vmatprep.subr.mxu0 0.0
    %656 = vmatpush1.msra.mxu0 0.0
    %657 = vmatprep.subr.mxu0 0.0
    %658 = vmatpush1.msra.mxu0 0.0
    %659 = vmatprep.subr.mxu0 0.0
    %660 = vmatpush1.msra.mxu0 0.0
    %661 = vmatprep.subr.mxu0 0.0
    %662 = vmatpush1.msra.mxu0 0.0
    %663 = vmatprep.subr.mxu0 0.0
    %664 = vmatpush1.msra.mxu0 0.0
    %665 = vmatprep.subr.mxu0 0.0
    %666 = vmatpush1.msra.mxu0 0.0
    %667 = vmatprep.subr.mxu0 0.0
    %668 = vmatpush1.msra.mxu0 0.0
    %669 = vmatprep.subr.mxu0 0.0
    %670 = vmatpush1.msra.mxu0 0.0
    %671 = vmatprep.subr.mxu0 0.0
    %672 = vmatpush1.msra.mxu0 0.0
    %673 = vmatprep.subr.mxu0 0.0
    %674 = vmatpush1.msra.mxu0 0.0
    %675 = vmatprep.subr.mxu0 0.0
    %676 = vmatpush1.msra.mxu0 0.0
    %677 = vmatprep.subr.mxu0 0.0
    %678 = vmatpush1.msra.mxu0 0.0
    %679 = vmatprep.subr.mxu0 0.0
    %680 = vmatpush1.msra.mxu0 0.0
    %681 = vmatprep.mubr.f32.mxu0 0.0
    %682 = vmatmul.mubr.f32.gmra.mrb[0].mxu0 %v615
    %v683 = vpop.f32.mrb[0].mxu0
    %v684 = vadd.f32 0.0, %v683
    %v685 = vpop.f32.mrb[0].mxu0
    %686 = vdwg.mxu0
    %v688 = vrot.slane %v684, 4
    %v690 = vadd.f32 %v127, %v688
    %v691 = vxor.u32 %v690, 2147483648
    %v692 = vmul.f32 %v691, 1.442695
    %v693 = vpow.pop %v692
    %v694 = vadd.f32 %v693, 1.0
    %v695 = vrcp.pop %v694
    %v696 = vmul.f32 1.0, %v695
    %v697 = vtanh.pop %v690
    %v699 = vrot.slane %v603, 7
    %v701 = vmul.f32 %v696, %v699
    %703 = vrot.lane.b32.xlu0 %v697, 64
    %v704 = vpop.permute.xlu0 %703
    %v706 = vmul.f32 %v696, %v704
    %708 = vrot.lane.b32.xlu0 %v706, 32
    %v709 = vpop.permute.xlu0 %708
    %v711 = vadd.f32 %v701, %v709
    %v712 = vtanh.pop %v711
    %714 = vrot.lane.b32.xlu0 %v712, 64
    %v715 = vpop.permute.xlu0 %714
    %v717 = vmul.f32 %v696, %v715
    %p718 = scmp.gt.s32.totalorder %s45, 4
    %s719 = scalar_select %p718, 1, 0
    %v720 = vstv %s719
    %vm721 = vcmp.eq.s32.totalorder %v720, 1
    %v722 = vrot.slane %v602, 7
    %v724 = vsel %vm721, %v717, %v722
    %v725 = vsel %vm721, %v711, %v699
    %727 = vrot.lane.b32.xlu0 %v724, 32
    %v728 = vpop.permute.xlu0 %727
    %v730 = vsel %vm56, %v728, %v725
    %s731 = scalar_lea.vmem [#allocation8], 4
    %vm732 = vcmask 520196
    %733 = vst.msk [vmem:[%s731 - $0x4] sm:$0x10] %vm732, %v730
    %v734 = vrot.slane %v724, 4
    %735 = vrot.lane.b32.xlu0 %v734, 32
    %v736 = vpop.permute.xlu0 %735
    %v737 = vsel %vm56, %v736, 0
    %739 = vmatprep.subr.mxu0 0.0
    %740 = vmatpush1.msra.mxu0 %v130
    %741 = vmatprep.subr.mxu0 0.0
    %742 = vmatpush1.msra.mxu0 %v131
    %743 = vmatprep.subr.mxu0 0.0
    %744 = vmatpush1.msra.mxu0 %v132
    %745 = vmatprep.subr.mxu0 0.0
    %746 = vmatpush1.msra.mxu0 %v133
    %747 = vmatprep.subr.mxu0 0.0
    %748 = vmatpush1.msra.mxu0 0.0
    %749 = vmatprep.subr.mxu0 0.0
    %750 = vmatpush1.msra.mxu0 0.0
    %751 = vmatprep.subr.mxu0 0.0
    %752 = vmatpush1.msra.mxu0 0.0
    %753 = vmatprep.subr.mxu0 0.0
    %754 = vmatpush1.msra.mxu0 0.0
    %755 = vmatprep.subr.mxu0 0.0
    %756 = vmatpush1.msra.mxu0 0.0
    %757 = vmatprep.subr.mxu0 0.0
    %758 = vmatpush1.msra.mxu0 0.0
    %759 = vmatprep.subr.mxu0 0.0
    %760 = vmatpush1.msra.mxu0 0.0
    %761 = vmatprep.subr.mxu0 0.0
    %762 = vmatpush1.msra.mxu0 0.0
    %763 = vmatprep.subr.mxu0 0.0
    %764 = vmatpush1.msra.mxu0 0.0
    %765 = vmatprep.subr.mxu0 0.0
    %766 = vmatpush1.msra.mxu0 0.0
    %767 = vmatprep.subr.mxu0 0.0
    %768 = vmatpush1.msra.mxu0 0.0
    %769 = vmatprep.subr.mxu0 0.0
    %770 = vmatpush1.msra.mxu0 0.0
    %771 = vmatprep.subr.mxu0 0.0
    %772 = vmatpush1.msra.mxu0 0.0
    %773 = vmatprep.subr.mxu0 0.0
    %774 = vmatpush1.msra.mxu0 0.0
    %775 = vmatprep.subr.mxu0 0.0
    %776 = vmatpush1.msra.mxu0 0.0
    %777 = vmatprep.subr.mxu0 0.0
    %778 = vmatpush1.msra.mxu0 0.0
    %779 = vmatprep.subr.mxu0 0.0
    %780 = vmatpush1.msra.mxu0 0.0
    %781 = vmatprep.subr.mxu0 0.0
    %782 = vmatpush1.msra.mxu0 0.0
    %783 = vmatprep.subr.mxu0 0.0
    %784 = vmatpush1.msra.mxu0 0.0
    %785 = vmatprep.subr.mxu0 0.0
    %786 = vmatpush1.msra.mxu0 0.0
    %787 = vmatprep.subr.mxu0 0.0
    %788 = vmatpush1.msra.mxu0 0.0
    %789 = vmatprep.subr.mxu0 0.0
    %790 = vmatpush1.msra.mxu0 0.0
    %791 = vmatprep.subr.mxu0 0.0
    %792 = vmatpush1.msra.mxu0 0.0
    %793 = vmatprep.subr.mxu0 0.0
    %794 = vmatpush1.msra.mxu0 0.0
    %795 = vmatprep.subr.mxu0 0.0
    %796 = vmatpush1.msra.mxu0 0.0
    %797 = vmatprep.subr.mxu0 0.0
    %798 = vmatpush1.msra.mxu0 0.0
    %799 = vmatprep.subr.mxu0 0.0
    %800 = vmatpush1.msra.mxu0 0.0
    %801 = vmatprep.subr.mxu0 0.0
    %802 = vmatpush1.msra.mxu0 0.0
    %803 = vmatprep.mubr.f32.mxu0 0.0
    %804 = vmatmul.mubr.f32.gmra.mrb[0].mxu0 %v737
    %v805 = vpop.f32.mrb[0].mxu0
    %v806 = vadd.f32 0.0, %v805
    %v807 = vpop.f32.mrb[0].mxu0
    %808 = vdwg.mxu0
    %v810 = vrot.slane %v806, 3
    %v812 = vadd.f32 %v127, %v810
    %v813 = vxor.u32 %v812, 2147483648
    %v814 = vmul.f32 %v813, 1.442695
    %v815 = vpow.pop %v814
    %v816 = vadd.f32 %v815, 1.0
    %v817 = vrcp.pop %v816
    %v818 = vmul.f32 1.0, %v817
    %v819 = vtanh.pop %v812
    %v821 = vrot.slane %v725, 7
    %v823 = vmul.f32 %v818, %v821
    %825 = vrot.lane.b32.xlu0 %v819, 64
    %v826 = vpop.permute.xlu0 %825
    %v828 = vmul.f32 %v818, %v826
    %830 = vrot.lane.b32.xlu0 %v828, 32
    %v831 = vpop.permute.xlu0 %830
    %v833 = vadd.f32 %v823, %v831
    %v834 = vtanh.pop %v833
    %836 = vrot.lane.b32.xlu0 %v834, 64
    %v837 = vpop.permute.xlu0 %836
    %v839 = vmul.f32 %v818, %v837
    %p840 = scmp.gt.s32.totalorder %s45, 5
    %s841 = scalar_select %p840, 1, 0
    %v842 = vstv %s841
    %vm843 = vcmp.eq.s32.totalorder %v842, 1
    %v844 = vrot.slane %v724, 7
    %v846 = vsel %vm843, %v839, %v844
    %v847 = vsel %vm843, %v833, %v821
    %849 = vrot.lane.b32.xlu0 %v846, 32
    %v850 = vpop.permute.xlu0 %849
    %v852 = vsel %vm56, %v850, %v847
    %s853 = scalar_lea.vmem [#allocation8], 5
    %vm854 = vcmask 521221
    %855 = vst.msk [vmem:[%s853 - $0x5] sm:$0x20] %vm854, %v852
    %v856 = vrot.slane %v846, 5
    %857 = vrot.lane.b32.xlu0 %v856, 32
    %v858 = vpop.permute.xlu0 %857
    %v859 = vsel %vm56, %v858, 0
    %861 = vmatprep.subr.mxu0 0.0
    %862 = vmatpush1.msra.mxu0 %v130
    %863 = vmatprep.subr.mxu0 0.0
    %864 = vmatpush1.msra.mxu0 %v131
    %865 = vmatprep.subr.mxu0 0.0
    %866 = vmatpush1.msra.mxu0 %v132
    %867 = vmatprep.subr.mxu0 0.0
    %868 = vmatpush1.msra.mxu0 %v133
    %869 = vmatprep.subr.mxu0 0.0
    %870 = vmatpush1.msra.mxu0 0.0
    %871 = vmatprep.subr.mxu0 0.0
    %872 = vmatpush1.msra.mxu0 0.0
    %873 = vmatprep.subr.mxu0 0.0
    %874 = vmatpush1.msra.mxu0 0.0
    %875 = vmatprep.subr.mxu0 0.0
    %876 = vmatpush1.msra.mxu0 0.0
    %877 = vmatprep.subr.mxu0 0.0
    %878 = vmatpush1.msra.mxu0 0.0
    %879 = vmatprep.subr.mxu0 0.0
    %880 = vmatpush1.msra.mxu0 0.0
    %881 = vmatprep.subr.mxu0 0.0
    %882 = vmatpush1.msra.mxu0 0.0
    %883 = vmatprep.subr.mxu0 0.0
    %884 = vmatpush1.msra.mxu0 0.0
    %885 = vmatprep.subr.mxu0 0.0
    %886 = vmatpush1.msra.mxu0 0.0
    %887 = vmatprep.subr.mxu0 0.0
    %888 = vmatpush1.msra.mxu0 0.0
    %889 = vmatprep.subr.mxu0 0.0
    %890 = vmatpush1.msra.mxu0 0.0
    %891 = vmatprep.subr.mxu0 0.0
    %892 = vmatpush1.msra.mxu0 0.0
    %893 = vmatprep.subr.mxu0 0.0
    %894 = vmatpush1.msra.mxu0 0.0
    %895 = vmatprep.subr.mxu0 0.0
    %896 = vmatpush1.msra.mxu0 0.0
    %897 = vmatprep.subr.mxu0 0.0
    %898 = vmatpush1.msra.mxu0 0.0
    %899 = vmatprep.subr.mxu0 0.0
    %900 = vmatpush1.msra.mxu0 0.0
    %901 = vmatprep.subr.mxu0 0.0
    %902 = vmatpush1.msra.mxu0 0.0
    %903 = vmatprep.subr.mxu0 0.0
    %904 = vmatpush1.msra.mxu0 0.0
    %905 = vmatprep.subr.mxu0 0.0
    %906 = vmatpush1.msra.mxu0 0.0
    %907 = vmatprep.subr.mxu0 0.0
    %908 = vmatpush1.msra.mxu0 0.0
    %909 = vmatprep.subr.mxu0 0.0
    %910 = vmatpush1.msra.mxu0 0.0
    %911 = vmatprep.subr.mxu0 0.0
    %912 = vmatpush1.msra.mxu0 0.0
    %913 = vmatprep.subr.mxu0 0.0
    %914 = vmatpush1.msra.mxu0 0.0
    %915 = vmatprep.subr.mxu0 0.0
    %916 = vmatpush1.msra.mxu0 0.0
    %917 = vmatprep.subr.mxu0 0.0
    %918 = vmatpush1.msra.mxu0 0.0
    %919 = vmatprep.subr.mxu0 0.0
    %920 = vmatpush1.msra.mxu0 0.0
    %921 = vmatprep.subr.mxu0 0.0
    %922 = vmatpush1.msra.mxu0 0.0
    %923 = vmatprep.subr.mxu0 0.0
    %924 = vmatpush1.msra.mxu0 0.0
    %925 = vmatprep.mubr.f32.mxu0 0.0
    %926 = vmatmul.mubr.f32.gmra.mrb[0].mxu0 %v859
    %v927 = vpop.f32.mrb[0].mxu0
    %v928 = vadd.f32 0.0, %v927
    %v929 = vpop.f32.mrb[0].mxu0
    %930 = vdwg.mxu0
    %v932 = vrot.slane %v928, 2
    %v934 = vadd.f32 %v127, %v932
    %v935 = vxor.u32 %v934, 2147483648
    %v936 = vmul.f32 %v935, 1.442695
    %v937 = vpow.pop %v936
    %v938 = vadd.f32 %v937, 1.0
    %v939 = vrcp.pop %v938
    %v940 = vmul.f32 1.0, %v939
    %v941 = vtanh.pop %v934
    %v943 = vrot.slane %v847, 7
    %v945 = vmul.f32 %v940, %v943
    %947 = vrot.lane.b32.xlu0 %v941, 64
    %v948 = vpop.permute.xlu0 %947
    %v950 = vmul.f32 %v940, %v948
    %952 = vrot.lane.b32.xlu0 %v950, 32
    %v953 = vpop.permute.xlu0 %952
    %v955 = vadd.f32 %v945, %v953
    %v956 = vtanh.pop %v955
    %958 = vrot.lane.b32.xlu0 %v956, 64
    %v959 = vpop.permute.xlu0 %958
    %v961 = vmul.f32 %v940, %v959
    %p962 = scmp.gt.s32.totalorder %s45, 6
    %s963 = scalar_select %p962, 1, 0
    %v964 = vstv %s963
    %vm965 = vcmp.eq.s32.totalorder %v964, 1
    %v966 = vrot.slane %v846, 7
    %v968 = vsel %vm965, %v961, %v966
    %v969 = vsel %vm965, %v955, %v943
    %971 = vrot.lane.b32.xlu0 %v968, 32
    %v972 = vpop.permute.xlu0 %971
    %v974 = vsel %vm56, %v972, %v969
    %s975 = scalar_lea.vmem [#allocation8], 6
    %vm976 = vcmask 522246
    %977 = vst.msk [vmem:[%s975 - $0x6] sm:$0x40] %vm976, %v974
    %v978 = vrot.slane %v968, 6
    %979 = vrot.lane.b32.xlu0 %v978, 32
    %v980 = vpop.permute.xlu0 %979
    %v981 = vsel %vm56, %v980, 0
    %983 = vmatprep.subr.mxu0 0.0
    %984 = vmatpush1.msra.mxu0 %v130
    %985 = vmatprep.subr.mxu0 0.0
    %986 = vmatpush1.msra.mxu0 %v131
    %987 = vmatprep.subr.mxu0 0.0
    %988 = vmatpush1.msra.mxu0 %v132
    %989 = vmatprep.subr.mxu0 0.0
    %990 = vmatpush1.msra.mxu0 %v133
    %991 = vmatprep.subr.mxu0 0.0
    %992 = vmatpush1.msra.mxu0 0.0
    %993 = vmatprep.subr.mxu0 0.0
    %994 = vmatpush1.msra.mxu0 0.0
    %995 = vmatprep.subr.mxu0 0.0
    %996 = vmatpush1.msra.mxu0 0.0
    %997 = vmatprep.subr.mxu0 0.0
    %998 = vmatpush1.msra.mxu0 0.0
    %999 = vmatprep.subr.mxu0 0.0
    %1000 = vmatpush1.msra.mxu0 0.0
    %1001 = vmatprep.subr.mxu0 0.0
    %1002 = vmatpush1.msra.mxu0 0.0
    %1003 = vmatprep.subr.mxu0 0.0
    %1004 = vmatpush1.msra.mxu0 0.0
    %1005 = vmatprep.subr.mxu0 0.0
    %1006 = vmatpush1.msra.mxu0 0.0
    %1007 = vmatprep.subr.mxu0 0.0
    %1008 = vmatpush1.msra.mxu0 0.0
    %1009 = vmatprep.subr.mxu0 0.0
    %1010 = vmatpush1.msra.mxu0 0.0
    %1011 = vmatprep.subr.mxu0 0.0
    %1012 = vmatpush1.msra.mxu0 0.0
    %1013 = vmatprep.subr.mxu0 0.0
    %1014 = vmatpush1.msra.mxu0 0.0
    %1015 = vmatprep.subr.mxu0 0.0
    %1016 = vmatpush1.msra.mxu0 0.0
    %1017 = vmatprep.subr.mxu0 0.0
    %1018 = vmatpush1.msra.mxu0 0.0
    %1019 = vmatprep.subr.mxu0 0.0
    %1020 = vmatpush1.msra.mxu0 0.0
    %1021 = vmatprep.subr.mxu0 0.0
    %1022 = vmatpush1.msra.mxu0 0.0
    %1023 = vmatprep.subr.mxu0 0.0
    %1024 = vmatpush1.msra.mxu0 0.0
    %1025 = vmatprep.subr.mxu0 0.0
    %1026 = vmatpush1.msra.mxu0 0.0
    %1027 = vmatprep.subr.mxu0 0.0
    %1028 = vmatpush1.msra.mxu0 0.0
    %1029 = vmatprep.subr.mxu0 0.0
    %1030 = vmatpush1.msra.mxu0 0.0
    %1031 = vmatprep.subr.mxu0 0.0
    %1032 = vmatpush1.msra.mxu0 0.0
    %1033 = vmatprep.subr.mxu0 0.0
    %1034 = vmatpush1.msra.mxu0 0.0
    %1035 = vmatprep.subr.mxu0 0.0
    %1036 = vmatpush1.msra.mxu0 0.0
    %1037 = vmatprep.subr.mxu0 0.0
    %1038 = vmatpush1.msra.mxu0 0.0
    %1039 = vmatprep.subr.mxu0 0.0
    %1040 = vmatpush1.msra.mxu0 0.0
    %1041 = vmatprep.subr.mxu0 0.0
    %1042 = vmatpush1.msra.mxu0 0.0
    %1043 = vmatprep.subr.mxu0 0.0
    %1044 = vmatpush1.msra.mxu0 0.0
    %1045 = vmatprep.subr.mxu0 0.0
    %1046 = vmatpush1.msra.mxu0 0.0
    %1047 = vmatprep.mubr.f32.mxu0 0.0
    %1048 = vmatmul.mubr.f32.gmra.mrb[0].mxu0 %v981
    %v1049 = vpop.f32.mrb[0].mxu0
    %v1050 = vadd.f32 0.0, %v1049
    %v1051 = vpop.f32.mrb[0].mxu0
    %1052 = vdwg.mxu0
    %v1054 = vrot.slane %v1050, 1
    %v1056 = vadd.f32 %v127, %v1054
    %v1057 = vxor.u32 %v1056, 2147483648
    %v1058 = vmul.f32 %v1057, 1.442695
    %v1059 = vpow.pop %v1058
    %v1060 = vadd.f32 %v1059, 1.0
    %v1061 = vrcp.pop %v1060
    %v1062 = vmul.f32 1.0, %v1061
    %v1063 = vtanh.pop %v1056
    %v1065 = vrot.slane %v969, 7
    %v1067 = vmul.f32 %v1062, %v1065
    %1069 = vrot.lane.b32.xlu0 %v1063, 64
    %v1070 = vpop.permute.xlu0 %1069
    %v1072 = vmul.f32 %v1062, %v1070
    %1074 = vrot.lane.b32.xlu0 %v1072, 32
    %v1075 = vpop.permute.xlu0 %1074
    %v1077 = vadd.f32 %v1067, %v1075
    %v1078 = vtanh.pop %v1077
    %1080 = vrot.lane.b32.xlu0 %v1078, 64
    %v1081 = vpop.permute.xlu0 %1080
    %v1083 = vmul.f32 %v1062, %v1081
    %p1084 = scmp.gt.s32.totalorder %s45, 7
    %s1085 = scalar_select %p1084, 1, 0
    %v1086 = vstv %s1085
    %vm1087 = vcmp.eq.s32.totalorder %v1086, 1
    %v1088 = vrot.slane %v968, 7
    %v1090 = vsel %vm1087, %v1083, %v1088
    %v1091 = vsel %vm1087, %v1077, %v1065
    %1093 = vrot.lane.b32.xlu0 %v1090, 32
    %v1094 = vpop.permute.xlu0 %1093
    %v1096 = vsel %vm56, %v1094, %v1091
    %s1097 = scalar_lea.vmem [#allocation8], 7
    %vm1098 = vcmask 523271
    %1099 = vst.msk [vmem:[%s1097 - $0x7] sm:$0x80] %vm1098, %v1096
    // Predicated region
    $region26: #{run.1} parent=1 // pred_check
      _
    $region27: #{run.1} parent=1 // pred_check_branch
      %1101 = sbr.rel (0) target = $region29
    $region28: #{run.1} parent=1 // pred_region
      %s1103 = ssub.s32 128, 128
      %1104 = vsyncadd [#allocation5], %s1103
      %s1105 = sshll.u32 [#allocation8], 4
      %s1106 = int_to_ptr.vmem [resolvable:$true] %s1105
      %1111 = dma.vmem_to_hbm [thread:$0]  %s1106, 128, %s4, [#allocation5], 16, 16, 1
    $region29: #{run.1} parent=1 // pred_fallthru
      _
    // Predicated region
    $region30: #{run.1} parent=1 // pred_check
      _
    $region31: #{run.1} parent=1 // pred_check_branch
      %1113 = sbr.rel (0) target = $region33
    $region32: #{run.1} parent=1 // pred_region
      %1114 = dma.done [#allocation5], 128
    $region33: #{run.1} parent=1 // pred_fallthru
      _
    %1115 = vsyncpa [#allocation4], 1
    %1116 = vsyncpa [#allocation7], 1
    %1117 = vsyncpa [#allocation5], 1

</llo_original>
